<compile_context>
chip_gen: v6e
topology: v6e:2x2x1
jax: 0.10.0
libtpu: 0.0.40
codegen_flags: <defaults>
</compile_context>

<pallas_src>
import functools

import jax
import jax.numpy as jnp
from jax.experimental import pallas as pl
from jax.experimental.pallas import tpu as pltpu


def _leaky_relu(h, slope=0.1):
    # torch forward uses negative_slope=0.1 explicitly.
    return jnp.where(h > 0, h, slope * h)


def _round_up(n, m):
    return ((n + m - 1) // m) * m


def _cdiv(a, b):
    return -(-a // b)


def default_pack():
    """Pack factor: 16 (K=256) on v6e/v7x; 8 (K=128 already fills MXU depth) on v5e."""
    try:
        kind = jax.devices()[0].device_kind.lower()
        if "v5 lite" in kind or "v5lite" in kind or "v5e" in kind:
            return 8
    except Exception:
        pass
    return 16


def decoder_kernel(x_ref, wx_ref, bx_ref, w2h_ref, w3h_ref, o_ref, *, pmid):
    """One batch tile of the 3-layer decoder in the lane-packed layout.

    x_ref   : [rb, P*in]                float32 packed activations (cast in-kernel)
    wx_ref  : [P*in, P*(2*mid+out)]     block-diag concat(W1, W2_x, W3_x), compute dtype
    bx_ref  : [1,  P*(2*mid+out)]       tiled concat(b1, b2, b3), float32
    w2h_ref : [P*mid, P*mid]            block-diag fc2 weight acting on the hidden part
    w3h_ref : [P*mid, P*out]            block-diag fc3 weight acting on the hidden part
    o_ref   : [rb, P*out]               float32 packed output
    """
    cdt = wx_ref.dtype
    x = x_ref[...].astype(cdt)          # f32 -> compute dtype, folded into the kernel

    # One fused MXU call for every x-sided term + one fused f32 bias add.
    xwb = (jnp.dot(x, wx_ref[...], preferred_element_type=jnp.float32)
           + bx_ref[...])

    # fc1: leaky_relu(x @ W1 + b1)           (lanes [:P*mid])
    x1 = _leaky_relu(xwb[:, :pmid])

    # fc2 on cat(x1, x): leaky_relu(x1 @ W2_h + (x @ W2_x + b2))
    h2 = (jnp.dot(x1.astype(cdt), w2h_ref[...], preferred_element_type=jnp.float32)
          + xwb[:, pmid:2 * pmid])
    x2 = _leaky_relu(h2)

    # fc3 on cat(x2, x): leaky_relu(x2 @ W3_h + (x @ W3_x + b3))
    h3 = (jnp.dot(x2.astype(cdt), w3h_ref[...], preferred_element_type=jnp.float32)
          + xwb[:, 2 * pmid:])
    o_ref[...] = _leaky_relu(h3).astype(o_ref.dtype)


def pack_decoder_params(params, pack=16, compute_dtype=jnp.bfloat16):
    """Build the lane-packed (block-diagonal) weights ONCE (hoisted out of the fwd path)."""
    P = int(pack)
    cdt = jnp.dtype(compute_dtype)
    eye = jnp.eye(P, dtype=jnp.float32)
    bd = lambda w: jnp.kron(eye, w.astype(jnp.float32))      # P copies on the diagonal

    wx = jnp.concatenate([bd(params["w1"]), bd(params["w2x"]), bd(params["w3x"])],
                         axis=1).astype(cdt)                  # [P*in, P*(2*mid+out)]
    bx = jnp.concatenate([jnp.tile(params["b1"], (1, P)),
                          jnp.tile(params["b2"], (1, P)),
                          jnp.tile(params["b3"], (1, P))],
                         axis=1).astype(jnp.float32)          # [1, P*(2*mid+out)]
    w2h = bd(params["w2h"]).astype(cdt)                       # [P*mid, P*mid]
    w3h = bd(params["w3h"]).astype(cdt)                       # [P*mid, P*out]
    return wx, bx, w2h, w3h


@functools.partial(jax.jit, static_argnames=("block_b",))
def decoder_forward(x, wx, bx, w2h, w3h, block_b=4096):
    """x: [B, input_dim] float32; (wx, bx, w2h, w3h) from pack_decoder_params."""
    B, in_dim = x.shape
    P = wx.shape[0] // in_dim            # pack factor baked into the weights
    pmid = w2h.shape[0]                  # P * intermediate_dim
    pout = w3h.shape[1]                  # P * output_dim
    out_dim = pout // P
    mid = pmid // P

    # Pack P rows into lanes.  The reshape is free (contiguous in HBM); padding is only
    # needed when B is not a multiple of P (<= P-1 rows).  Pad rows produce garbage that
    # stays confined to their own lane-block (block-diag weights) and is sliced off.
    Bp = _round_up(B, P)
    xr = x if Bp == B else jnp.pad(x, ((0, Bp - B), (0, 0)))
    R = Bp // P
    xp = xr.reshape(R, P * in_dim)

    # Tile selection: pick the tile COUNT first (>=2 balanced tiles when there is enough
    # work so both v7x TensorCores are used), then a sublane-aligned tile size.  The
    # trailing partial block (R % rb != 0) is handled by Pallas (OOB input reads stay in
    # their own rows; OOB output writes are dropped) -> no extra pad / slice HBM passes.
    if R <= 8:
        rb = R                           # block rows == full array rows (allowed)
    else:
        rb_cap = max(8, block_b // P)    # cap in packed rows (~block_b original rows)
        n_tiles = max(2, _cdiv(R, rb_cap))
        if n_tiles % 2:
            n_tiles += 1
        rb = min(_round_up(_cdiv(R, n_tiles), 8), _round_up(R, 8))
    grid = (_cdiv(R, rb),)

    # Actual (block-diagonal) MXU work + HBM traffic, as a scheduling hint for XLA.
    flops = 2 * Bp * P * (in_dim * (2 * mid + out_dim) + mid * mid + mid * out_dim)
    bytes_accessed = (xp.size * xp.dtype.itemsize + R * pout * 4
                      + wx.size * wx.dtype.itemsize + bx.size * 4
                      + w2h.size * w2h.dtype.itemsize + w3h.size * w3h.dtype.itemsize)

    const = lambda a: pl.BlockSpec(a.shape, lambda i: (0, 0))

    out = pl.pallas_call(
        functools.partial(decoder_kernel, pmid=pmid),
        out_shape=jax.ShapeDtypeStruct((R, pout), jnp.float32),
        grid_spec=pltpu.PrefetchScalarGridSpec(
            num_scalar_prefetch=0,
            grid=grid,
            in_specs=[pl.BlockSpec((rb, P * in_dim), lambda i: (i, 0)),
                      const(wx), const(bx), const(w2h), const(w3h)],
            out_specs=pl.BlockSpec((rb, pout), lambda i: (i, 0)),
        ),
        compiler_params=pltpu.CompilerParams(
            dimension_semantics=("parallel",)),
        cost_estimate=pl.CostEstimate(flops=flops, transcendentals=0,
                                      bytes_accessed=bytes_accessed),
    )(xp, wx, bx, w2h, w3h)

    out = out.reshape(Bp, out_dim)       # free reshape back to [Bp, out]
    return out if Bp == B else out[:B]


def init_decoder_params(key, input_dim, intermediate_dim, output_dim):
    """Deterministic init mirroring the torch module's shapes.

    torch stores Linear weights as [out, in] and computes x @ W.T + b.  We store the
    transposed weights [in, out]; the fc2/fc3 weights (acting on cat(h, x)) are split
    into the part that multiplies h and the part that multiplies x.
    """
    ks = jax.random.split(key, 6)
    # torch: nn.init.uniform_(weight, -1, 1) for all three layers.
    W1 = jax.random.uniform(ks[0], (intermediate_dim, input_dim),
                            minval=-1.0, maxval=1.0)
    W2 = jax.random.uniform(ks[1], (intermediate_dim, intermediate_dim + input_dim),
                            minval=-1.0, maxval=1.0)
    W3 = jax.random.uniform(ks[2], (output_dim, intermediate_dim + input_dim),
                            minval=-1.0, maxval=1.0)

    # torch default bias init: uniform(-1/sqrt(fan_in), 1/sqrt(fan_in)).
    def bias(k, fan_in, n):
        bound = 1.0 / jnp.sqrt(fan_in)
        return jax.random.uniform(k, (1, n), minval=-bound, maxval=bound)

    b1 = bias(ks[3], input_dim, intermediate_dim)
    b2 = bias(ks[4], intermediate_dim + input_dim, intermediate_dim)
    b3 = bias(ks[5], intermediate_dim + input_dim, output_dim)

    W1t = W1.T                                   # [in, mid]
    W2t = W2.T                                   # [mid+in, mid]
    W3t = W3.T                                   # [mid+in, out]
    return {
        "w1": W1t, "b1": b1,
        "w2h": W2t[:intermediate_dim], "w2x": W2t[intermediate_dim:], "b2": b2,
        "w3h": W3t[:intermediate_dim], "w3x": W3t[intermediate_dim:], "b3": b3,
    }


def decoder_ref(x, params, compute_dtype=jnp.float32):
    """Pure-JAX reference matching the torch forward (operands optionally cast to the
    kernel's compute dtype, with f32 accumulation)."""
    cdt = jnp.dtype(compute_dtype)
    f32 = jnp.float32
    lrelu = lambda h: jnp.where(h > 0, h, 0.1 * h)
    xc = x.astype(cdt)
    x1 = lrelu(jnp.dot(xc, params["w1"].astype(cdt), preferred_element_type=f32)
               + params["b1"])
    x2 = lrelu(jnp.dot(x1.astype(cdt), params["w2h"].astype(cdt),
                       preferred_element_type=f32)
               + jnp.dot(xc, params["w2x"].astype(cdt), preferred_element_type=f32)
               + params["b2"])
    x3 = lrelu(jnp.dot(x2.astype(cdt), params["w3h"].astype(cdt),
                       preferred_element_type=f32)
               + jnp.dot(xc, params["w3x"].astype(cdt), preferred_element_type=f32)
               + params["b3"])
    return x3


if __name__ == "__main__":
    key = jax.random.PRNGKey(0)
    k_param, k_x = jax.random.split(key)

    input_dim, intermediate_dim, output_dim = 16, 32, 8
    params = init_decoder_params(k_param, input_dim, intermediate_dim, output_dim)

    P = default_pack()
    packed_f32 = pack_decoder_params(params, pack=P, compute_dtype=jnp.float32)
    packed_bf16 = pack_decoder_params(params, pack=P, compute_dtype=jnp.bfloat16)

    # (1) Exact f32 path, small batch.
    batch = 24
    x = jax.random.normal(k_x, (batch, input_dim), dtype=jnp.float32)
    out_f32 = jax.block_until_ready(decoder_forward(x, *packed_f32))
    ref_f32 = decoder_ref(x, params, compute_dtype=jnp.float32)
    assert out_f32.shape == (batch, output_dim)
    assert jnp.allclose(out_f32, ref_f32, rtol=1e-5, atol=1e-4), \
        float(jnp.max(jnp.abs(out_f32 - ref_f32)))

    # (2) Batch not a multiple of the pack factor (exercises the <=P-1 row pad path).
    x_odd = jax.random.normal(jax.random.PRNGKey(1), (13, input_dim),
                              dtype=jnp.float32)
    out_odd = jax.block_until_ready(decoder_forward(x_odd, *packed_f32))
    ref_odd = decoder_ref(x_odd, params, compute_dtype=jnp.float32)
    assert out_odd.shape == (13, output_dim)
    assert jnp.allclose(out_odd, ref_odd, rtol=1e-5, atol=1e-4)

    # (3) Multi-tile grid with a trailing partial block (both cores, no extra passes).
    x_big = jax.random.normal(jax.random.PRNGKey(2), (200, input_dim),
                              dtype=jnp.float32)
    out_big = jax.block_until_ready(decoder_forward(x_big, *packed_f32, block_b=128))
    ref_big = decoder_ref(x_big, params, compute_dtype=jnp.float32)
    assert out_big.shape == (200, output_dim)
    assert jnp.allclose(out_big, ref_big, rtol=1e-5, atol=1e-4)

    # (4) Default bf16-operand / f32-accumulate fast path (v5e/v6e/v7x MXU).
    out_bf16 = jax.block_until_ready(decoder_forward(x, *packed_bf16))
    ref_bf16 = decoder_ref(x, params, compute_dtype=jnp.bfloat16)
    assert jnp.allclose(out_bf16, ref_bf16, rtol=1e-3, atol=1e-2), \
        float(jnp.max(jnp.abs(out_bf16 - ref_bf16)))
    scale = float(jnp.max(jnp.abs(ref_f32))) + 1e-6
    assert float(jnp.max(jnp.abs(out_bf16 - ref_f32))) / scale < 0.1

    print("KERNEL_OK")
</pallas_src>

<mosaic_0001>
module attributes {stable_mosaic.version = 11 : i64} {
  func.func @decoder_kernel(%arg0: i32, %arg1: memref<2x256xf32, #tpu.memory_space<vmem>>, %arg2: memref<256x1152xf32, #tpu.memory_space<vmem>>, %arg3: memref<1x1152xf32, #tpu.memory_space<vmem>>, %arg4: memref<512x512xf32, #tpu.memory_space<vmem>>, %arg5: memref<512x128xf32, #tpu.memory_space<vmem>>, %arg6: memref<2x128xf32, #tpu.memory_space<vmem>>) attributes {dimension_semantics = [#tpu.dimension_semantics<parallel>], iteration_bounds = array<i64: 1>, scalar_prefetch = 0 : i64, scratch_operands = 0 : i64, tpu.core_type = #tpu.core_type<tc>, window_params = [{transform_indices = @transform_0, window_bounds = array<i64: 2, 256>}, {pipeline_mode = #tpu.pipeline_mode<synchronous>, transform_indices = @transform_1, window_bounds = array<i64: 256, 1152>}, {pipeline_mode = #tpu.pipeline_mode<synchronous>, transform_indices = @transform_2, window_bounds = array<i64: 1, 1152>}, {pipeline_mode = #tpu.pipeline_mode<synchronous>, transform_indices = @transform_3, window_bounds = array<i64: 512, 512>}, {pipeline_mode = #tpu.pipeline_mode<synchronous>, transform_indices = @transform_4, window_bounds = array<i64: 512, 128>}, {transform_indices = @transform_5, window_bounds = array<i64: 2, 128>}]} {
    %c0 = arith.constant 0 : index
    %c0_0 = arith.constant 0 : index
    %0 = vector.load %arg1[%c0, %c0_0] : memref<2x256xf32, #tpu.memory_space<vmem>>, vector<2x256xf32>
    %c0_1 = arith.constant 0 : index
    %c0_2 = arith.constant 0 : index
    %1 = vector.load %arg2[%c0_1, %c0_2] : memref<256x1152xf32, #tpu.memory_space<vmem>>, vector<256x1152xf32>
    %cst = arith.constant dense<0.000000e+00> : vector<2x1152xf32>
    %2 = tpu.matmul %0, %1, %cst {dimension_numbers = #tpu.dot_dimension_numbers<[1], [0], [0], [1], [0, 0, 1, 1], [], []>} : vector<2x256xf32>, vector<256x1152xf32>, vector<2x1152xf32> -> vector<2x1152xf32>
    %c0_3 = arith.constant 0 : index
    %c0_4 = arith.constant 0 : index
    %3 = vector.load %arg3[%c0_3, %c0_4] : memref<1x1152xf32, #tpu.memory_space<vmem>>, vector<1x1152xf32>
    %4 = vector.broadcast %3 : vector<1x1152xf32> to vector<2x1152xf32>
    %5 = arith.addf %2, %4 : vector<2x1152xf32>
    %6 = vector.extract_strided_slice %5 {offsets = [0, 0], sizes = [2, 512], strides = [1, 1]} : vector<2x1152xf32> to vector<2x512xf32>
    %cst_5 = arith.constant 0.000000e+00 : f32
    %7 = vector.broadcast %cst_5 : f32 to vector<2x512xf32>
    %8 = arith.cmpf ogt, %6, %7 : vector<2x512xf32>
    %cst_6 = arith.constant 1.000000e-01 : f32
    %9 = vector.broadcast %cst_6 : f32 to vector<2x512xf32>
    %10 = arith.mulf %9, %6 : vector<2x512xf32>
    %11 = arith.select %8, %6, %10 : vector<2x512xi1>, vector<2x512xf32>
    %c0_7 = arith.constant 0 : index
    %c0_8 = arith.constant 0 : index
    %12 = vector.load %arg4[%c0_7, %c0_8] : memref<512x512xf32, #tpu.memory_space<vmem>>, vector<512x512xf32>
    %cst_9 = arith.constant dense<0.000000e+00> : vector<2x512xf32>
    %13 = tpu.matmul %11, %12, %cst_9 {dimension_numbers = #tpu.dot_dimension_numbers<[1], [0], [0], [1], [0, 0, 1, 1], [], []>} : vector<2x512xf32>, vector<512x512xf32>, vector<2x512xf32> -> vector<2x512xf32>
    %14 = vector.extract_strided_slice %5 {offsets = [0, 512], sizes = [2, 512], strides = [1, 1]} : vector<2x1152xf32> to vector<2x512xf32>
    %15 = arith.addf %13, %14 : vector<2x512xf32>
    %cst_10 = arith.constant 0.000000e+00 : f32
    %16 = vector.broadcast %cst_10 : f32 to vector<2x512xf32>
    %17 = arith.cmpf ogt, %15, %16 : vector<2x512xf32>
    %cst_11 = arith.constant 1.000000e-01 : f32
    %18 = vector.broadcast %cst_11 : f32 to vector<2x512xf32>
    %19 = arith.mulf %18, %15 : vector<2x512xf32>
    %20 = arith.select %17, %15, %19 : vector<2x512xi1>, vector<2x512xf32>
    %c0_12 = arith.constant 0 : index
    %c0_13 = arith.constant 0 : index
    %21 = vector.load %arg5[%c0_12, %c0_13] : memref<512x128xf32, #tpu.memory_space<vmem>>, vector<512x128xf32>
    %cst_14 = arith.constant dense<0.000000e+00> : vector<2x128xf32>
    %22 = tpu.matmul %20, %21, %cst_14 {dimension_numbers = #tpu.dot_dimension_numbers<[1], [0], [0], [1], [0, 0, 1, 1], [], []>} : vector<2x512xf32>, vector<512x128xf32>, vector<2x128xf32> -> vector<2x128xf32>
    %23 = vector.extract_strided_slice %5 {offsets = [0, 1024], sizes = [2, 128], strides = [1, 1]} : vector<2x1152xf32> to vector<2x128xf32>
    %24 = arith.addf %22, %23 : vector<2x128xf32>
    %cst_15 = arith.constant 0.000000e+00 : f32
    %25 = vector.broadcast %cst_15 : f32 to vector<2x128xf32>
    %26 = arith.cmpf ogt, %24, %25 : vector<2x128xf32>
    %cst_16 = arith.constant 1.000000e-01 : f32
    %27 = vector.broadcast %cst_16 : f32 to vector<2x128xf32>
    %28 = arith.mulf %27, %24 : vector<2x128xf32>
    %29 = arith.select %26, %24, %28 : vector<2x128xi1>, vector<2x128xf32>
    %c0_17 = arith.constant 0 : index
    %c0_18 = arith.constant 0 : index
    %30 = vector.load %arg6[%c0_17, %c0_18] : memref<2x128xf32, #tpu.memory_space<vmem>>, vector<2x128xf32>
    tpu.vector_store %arg6[%c0_17, %c0_18], %29 {strides = array<i32>} : memref<2x128xf32, #tpu.memory_space<vmem>>, vector<2x128xf32>,
    return
  }
  func.func @transform_0(%arg0: i32) -> (i32, i32) {
    %c0_i32 = arith.constant 0 : i32
    %c0_i32_0 = arith.constant 0 : i32
    return %arg0, %c0_i32 : i32, i32
  }
  func.func @transform_1(%arg0: i32) -> (i32, i32) {
    %c0_i32 = arith.constant 0 : i32
    %c0_i32_0 = arith.constant 0 : i32
    %c0_i32_1 = arith.constant 0 : i32
    return %c0_i32, %c0_i32_0 : i32, i32
  }
  func.func @transform_2(%arg0: i32) -> (i32, i32) {
    %c0_i32 = arith.constant 0 : i32
    %c0_i32_0 = arith.constant 0 : i32
    %c0_i32_1 = arith.constant 0 : i32
    return %c0_i32, %c0_i32_0 : i32, i32
  }
  func.func @transform_3(%arg0: i32) -> (i32, i32) {
    %c0_i32 = arith.constant 0 : i32
    %c0_i32_0 = arith.constant 0 : i32
    %c0_i32_1 = arith.constant 0 : i32
    return %c0_i32, %c0_i32_0 : i32, i32
  }
  func.func @transform_4(%arg0: i32) -> (i32, i32) {
    %c0_i32 = arith.constant 0 : i32
    %c0_i32_0 = arith.constant 0 : i32
    %c0_i32_1 = arith.constant 0 : i32
    return %c0_i32, %c0_i32_0 : i32, i32
  }
  func.func @transform_5(%arg0: i32) -> (i32, i32) {
    %c0_i32 = arith.constant 0 : i32
    %c0_i32_0 = arith.constant 0 : i32
    return %arg0, %c0_i32 : i32, i32
  }
}

</mosaic_0001>

<llo_original>
// kernel: decoder_forward.1
$region0: #{decoder_forward.1}
  #allocation0 [shape = 'u32[]', space=smem, size = 0x4, offset = 0x4, fixed_abs, tag = 'smem constant byte address 0x4 - core index']
  #allocation1 [shape = 'u32[144,128]{1,0:T(1,128)}', space=vmem, size = 0x12000, scoped, tag = 'internal scratch']
  %s0 = inlined_call_operand.vmem [shape: f32[2,256], index: 0, kind: input, shape index: {}]
  %s1 = inlined_call_operand.hbm [shape: f32[256,1152], index: 1, kind: input, shape index: {}]
  %s2 = inlined_call_operand.hbm [shape: f32[1,1152], index: 2, kind: input, shape index: {}]
  %s3 = inlined_call_operand.hbm [shape: f32[512,512], index: 3, kind: input, shape index: {}]
  %s4 = inlined_call_operand.hbm [shape: f32[512,128], index: 4, kind: input, shape index: {}]
  %s5 = inlined_call_operand.vmem [shape: f32[2,128], index: 5, kind: output, shape index: {}]
  %s6 = sld [smem:[#allocation0]]
  $region46: #{decoder_forward.1} parent=0
    _
  %s8 = ssub.s32 1, %s6
  %s9 = scalar_select 0, %s8, %s6
  $region1: #{decoder_forward.1} parent=0
    #allocation2 [shape = 'u8[1179648]{0}', space=vmem, size = 0x120000, scoped, tag = 'input window, operand 1, single buffered']
    #allocation3 [shape = 's32[1]{0}', space=sflag, size = 0x4, scoped, tag = 'scoped memory for decoder_forward.1']
    #allocation4 [shape = 'u8[4608]{0}', space=vmem, size = 0x1400, scoped, tag = 'input window, operand 2, single buffered']
    #allocation5 [shape = 's32[1]{0}', space=sflag, size = 0x4, scoped, tag = 'scoped memory for decoder_forward.1']
    #allocation6 [shape = 'u8[1048576]{0}', space=vmem, size = 0x100000, scoped, tag = 'input window, operand 3, single buffered']
    #allocation7 [shape = 'u8[262144]{0}', space=vmem, size = 0x40000, scoped, tag = 'input window, operand 4, single buffered']
    #allocation8 [shape = 's32[1]{0}', space=sflag, size = 0x4, scoped, tag = 'scoped memory for decoder_forward.1']
    %10 = vsyncpa [#allocation3], 0
    %11 = vsyncpa [#allocation5], 0
    %12 = vsyncpa [#allocation8], 0
    // Predicated region
    $region2: #{decoder_forward.1} parent=1 // pred_check
      _
    $region3: #{decoder_forward.1} parent=1 // pred_check_branch
      %14 = sbr.rel (0) target = $region5
    $region4: #{decoder_forward.1} parent=1 // pred_region
      _
    $region5: #{decoder_forward.1} parent=1 // pred_fallthru
      _
    // Predicated region
    $region6: #{decoder_forward.1} parent=1 // pred_check
      _
    $region7: #{decoder_forward.1} parent=1 // pred_check_branch
      %16 = sbr.rel (0) target = $region9
    $region8: #{decoder_forward.1} parent=1 // pred_region
      %s18 = ssub.s32 36864, 36864
      %19 = vsyncadd [#allocation3], %s18
      %s20 = sshll.u32 [#allocation2], 4
      %s21 = int_to_ptr.vmem [resolvable:$true] %s20
      %26 = dma.hbm_to_vmem [thread:$0]  %s1, 36864, %s21, [#allocation3], 1152, 1152, 72
    $region9: #{decoder_forward.1} parent=1 // pred_fallthru
      _
    // Predicated region
    $region10: #{decoder_forward.1} parent=1 // pred_check
      _
    $region11: #{decoder_forward.1} parent=1 // pred_check_branch
      %28 = sbr.rel (0) target = $region13
    $region12: #{decoder_forward.1} parent=1 // pred_region
      %s30 = ssub.s32 144, 144
      %31 = vsyncadd [#allocation5], %s30
      %s33 = sshll.u32 [#allocation4], 4
      %s34 = int_to_ptr.vmem [resolvable:$true] %s33
      %36 = dma.hbm_to_vmem [thread:$0]  %s2, 144, %s34, [#allocation5]
    $region13: #{decoder_forward.1} parent=1 // pred_fallthru
      _
    // Predicated region
    $region14: #{decoder_forward.1} parent=1 // pred_check
      _
    $region15: #{decoder_forward.1} parent=1 // pred_check_branch
      %38 = sbr.rel (0) target = $region17
    $region16: #{decoder_forward.1} parent=1 // pred_region
      %s40 = ssub.s32 32768, 32768
      %41 = vsyncadd [#allocation5], %s40
      %s42 = sshll.u32 [#allocation6], 4
      %s43 = int_to_ptr.vmem [resolvable:$true] %s42
      %48 = dma.hbm_to_vmem [thread:$0]  %s3, 32768, %s43, [#allocation5], 512, 512, 32
    $region17: #{decoder_forward.1} parent=1 // pred_fallthru
      _
    // Predicated region
    $region18: #{decoder_forward.1} parent=1 // pred_check
      _
    $region19: #{decoder_forward.1} parent=1 // pred_check_branch
      %50 = sbr.rel (0) target = $region21
    $region20: #{decoder_forward.1} parent=1 // pred_region
      %s52 = ssub.s32 8192, 8192
      %53 = vsyncadd [#allocation8], %s52
      %s54 = sshll.u32 [#allocation7], 4
      %s55 = int_to_ptr.vmem [resolvable:$true] %s54
      %60 = dma.hbm_to_vmem [thread:$0]  %s4, 8192, %s55, [#allocation8], 128, 128, 8
    $region21: #{decoder_forward.1} parent=1 // pred_fallthru
      _
    // Predicated region
    $region22: #{decoder_forward.1} parent=1 // pred_check
      _
    $region23: #{decoder_forward.1} parent=1 // pred_check_branch
      %62 = sbr.rel (0) target = $region25
    $region24: #{decoder_forward.1} parent=1 // pred_region
      %63 = dma.done [#allocation3], 36864
    $region25: #{decoder_forward.1} parent=1 // pred_fallthru
      _
    // Predicated region
    $region26: #{decoder_forward.1} parent=1 // pred_check
      _
    $region27: #{decoder_forward.1} parent=1 // pred_check_branch
      %65 = sbr.rel (0) target = $region29
    $region28: #{decoder_forward.1} parent=1 // pred_region
      %66 = dma.done [#allocation5], 144
    $region29: #{decoder_forward.1} parent=1 // pred_fallthru
      _
    // Predicated region
    $region30: #{decoder_forward.1} parent=1 // pred_check
      _
    $region31: #{decoder_forward.1} parent=1 // pred_check_branch
      %68 = sbr.rel (0) target = $region33
    $region32: #{decoder_forward.1} parent=1 // pred_region
      %69 = dma.done [#allocation5], 32768
    $region33: #{decoder_forward.1} parent=1 // pred_fallthru
      _
    // Predicated region
    $region34: #{decoder_forward.1} parent=1 // pred_check
      _
    $region35: #{decoder_forward.1} parent=1 // pred_check_branch
      %71 = sbr.rel (0) target = $region37
    $region36: #{decoder_forward.1} parent=1 // pred_region
      %72 = dma.done [#allocation8], 8192
    $region37: #{decoder_forward.1} parent=1 // pred_fallthru
      _
    %v73 = vld [vmem:[%s0] sm:$0xf]
    %v74 = vld [vmem:[#allocation2] sm:$0xff]
    %v75 = vld [vmem:[#allocation2 + $0x8] sm:$0xff]
    %v76 = vld [vmem:[#allocation2 + $0x10] sm:$0xff]
    %v77 = vld [vmem:[#allocation2 + $0x18] sm:$0xff]
    %v78 = vld [vmem:[#allocation2 + $0x20] sm:$0xff]
    %v79 = vld [vmem:[#allocation2 + $0x28] sm:$0xff]
    %v80 = vld [vmem:[#allocation2 + $0x30] sm:$0xff]
    %v81 = vld [vmem:[#allocation2 + $0x38] sm:$0xff]
    %v82 = vld [vmem:[#allocation2 + $0x40] sm:$0xff]
    %v83 = vld [vmem:[#allocation2 + $0x48] sm:$0xff]
    %v84 = vld [vmem:[#allocation2 + $0x50] sm:$0xff]
    %v85 = vld [vmem:[#allocation2 + $0x58] sm:$0xff]
    %v86 = vld [vmem:[#allocation2 + $0x60] sm:$0xff]
    %v87 = vld [vmem:[#allocation2 + $0x68] sm:$0xff]
    %v88 = vld [vmem:[#allocation2 + $0x70] sm:$0xff]
    %v89 = vld [vmem:[#allocation2 + $0x78] sm:$0xff]
    %v90 = vld [vmem:[#allocation2 + $0x80] sm:$0xff]
    %v91 = vld [vmem:[#allocation2 + $0x88] sm:$0xff]
    %v92 = vld [vmem:[#allocation2 + $0x90] sm:$0xff]
    %v93 = vld [vmem:[#allocation2 + $0x98] sm:$0xff]
    %v94 = vld [vmem:[#allocation2 + $0xa0] sm:$0xff]
    %v95 = vld [vmem:[#allocation2 + $0xa8] sm:$0xff]
    %v96 = vld [vmem:[#allocation2 + $0xb0] sm:$0xff]
    %v97 = vld [vmem:[#allocation2 + $0xb8] sm:$0xff]
    %v98 = vld [vmem:[#allocation2 + $0xc0] sm:$0xff]
    %v99 = vld [vmem:[#allocation2 + $0xc8] sm:$0xff]
    %v100 = vld [vmem:[#allocation2 + $0xd0] sm:$0xff]
    %v101 = vld [vmem:[#allocation2 + $0xd8] sm:$0xff]
    %v102 = vld [vmem:[#allocation2 + $0xe0] sm:$0xff]
    %v103 = vld [vmem:[#allocation2 + $0xe8] sm:$0xff]
    %v104 = vld [vmem:[#allocation2 + $0xf0] sm:$0xff]
    %v105 = vld [vmem:[#allocation2 + $0xf8] sm:$0xff]
    %v106 = vld [vmem:[#allocation2 + $0x100] sm:$0xff]
    %v107 = vld [vmem:[#allocation2 + $0x108] sm:$0xff]
    %v108 = vld [vmem:[#allocation2 + $0x110] sm:$0xff]
    %v109 = vld [vmem:[#allocation2 + $0x118] sm:$0xff]
    %v110 = vld [vmem:[#allocation2 + $0x120] sm:$0xff]
    %v111 = vld [vmem:[#allocation2 + $0x128] sm:$0xff]
    %v112 = vld [vmem:[#allocation2 + $0x130] sm:$0xff]
    %v113 = vld [vmem:[#allocation2 + $0x138] sm:$0xff]
    %v114 = vld [vmem:[#allocation2 + $0x140] sm:$0xff]
    %v115 = vld [vmem:[#allocation2 + $0x148] sm:$0xff]
    %v116 = vld [vmem:[#allocation2 + $0x150] sm:$0xff]
    %v117 = vld [vmem:[#allocation2 + $0x158] sm:$0xff]
    %v118 = vld [vmem:[#allocation2 + $0x160] sm:$0xff]
    %v119 = vld [vmem:[#allocation2 + $0x168] sm:$0xff]
    %v120 = vld [vmem:[#allocation2 + $0x170] sm:$0xff]
    %v121 = vld [vmem:[#allocation2 + $0x178] sm:$0xff]
    %v122 = vld [vmem:[#allocation2 + $0x180] sm:$0xff]
    %v123 = vld [vmem:[#allocation2 + $0x188] sm:$0xff]
    %v124 = vld [vmem:[#allocation2 + $0x190] sm:$0xff]
    %v125 = vld [vmem:[#allocation2 + $0x198] sm:$0xff]
    %v126 = vld [vmem:[#allocation2 + $0x1a0] sm:$0xff]
    %v127 = vld [vmem:[#allocation2 + $0x1a8] sm:$0xff]
    %v128 = vld [vmem:[#allocation2 + $0x1b0] sm:$0xff]
    %v129 = vld [vmem:[#allocation2 + $0x1b8] sm:$0xff]
    %v130 = vld [vmem:[#allocation2 + $0x1c0] sm:$0xff]
    %v131 = vld [vmem:[#allocation2 + $0x1c8] sm:$0xff]
    %v132 = vld [vmem:[#allocation2 + $0x1d0] sm:$0xff]
    %v133 = vld [vmem:[#allocation2 + $0x1d8] sm:$0xff]
    %v134 = vld [vmem:[#allocation2 + $0x1e0] sm:$0xff]
    %v135 = vld [vmem:[#allocation2 + $0x1e8] sm:$0xff]
    %v136 = vld [vmem:[#allocation2 + $0x1f0] sm:$0xff]
    %v137 = vld [vmem:[#allocation2 + $0x1f8] sm:$0xff]
    %v138 = vld [vmem:[#allocation2 + $0x200] sm:$0xff]
    %v139 = vld [vmem:[#allocation2 + $0x208] sm:$0xff]
    %v140 = vld [vmem:[#allocation2 + $0x210] sm:$0xff]
    %v141 = vld [vmem:[#allocation2 + $0x218] sm:$0xff]
    %v142 = vld [vmem:[#allocation2 + $0x220] sm:$0xff]
    %v143 = vld [vmem:[#allocation2 + $0x228] sm:$0xff]
    %v144 = vld [vmem:[#allocation2 + $0x230] sm:$0xff]
    %v145 = vld [vmem:[#allocation2 + $0x238] sm:$0xff]
    %v146 = vld [vmem:[#allocation2 + $0x240] sm:$0xff]
    %v147 = vld [vmem:[#allocation2 + $0x248] sm:$0xff]
    %v148 = vld [vmem:[#allocation2 + $0x250] sm:$0xff]
    %v149 = vld [vmem:[#allocation2 + $0x258] sm:$0xff]
    %v150 = vld [vmem:[#allocation2 + $0x260] sm:$0xff]
    %v151 = vld [vmem:[#allocation2 + $0x268] sm:$0xff]
    %v152 = vld [vmem:[#allocation2 + $0x270] sm:$0xff]
    %v153 = vld [vmem:[#allocation2 + $0x278] sm:$0xff]
    %v154 = vld [vmem:[#allocation2 + $0x280] sm:$0xff]
    %v155 = vld [vmem:[#allocation2 + $0x288] sm:$0xff]
    %v156 = vld [vmem:[#allocation2 + $0x290] sm:$0xff]
    %v157 = vld [vmem:[#allocation2 + $0x298] sm:$0xff]
    %v158 = vld [vmem:[#allocation2 + $0x2a0] sm:$0xff]
    %v159 = vld [vmem:[#allocation2 + $0x2a8] sm:$0xff]
    %v160 = vld [vmem:[#allocation2 + $0x2b0] sm:$0xff]
    %v161 = vld [vmem:[#allocation2 + $0x2b8] sm:$0xff]
    %v162 = vld [vmem:[#allocation2 + $0x2c0] sm:$0xff]
    %v163 = vld [vmem:[#allocation2 + $0x2c8] sm:$0xff]
    %v164 = vld [vmem:[#allocation2 + $0x2d0] sm:$0xff]
    %v165 = vld [vmem:[#allocation2 + $0x2d8] sm:$0xff]
    %v166 = vld [vmem:[#allocation2 + $0x2e0] sm:$0xff]
    %v167 = vld [vmem:[#allocation2 + $0x2e8] sm:$0xff]
    %v168 = vld [vmem:[#allocation2 + $0x2f0] sm:$0xff]
    %v169 = vld [vmem:[#allocation2 + $0x2f8] sm:$0xff]
    %v170 = vld [vmem:[#allocation2 + $0x300] sm:$0xff]
    %v171 = vld [vmem:[#allocation2 + $0x308] sm:$0xff]
    %v172 = vld [vmem:[#allocation2 + $0x310] sm:$0xff]
    %v173 = vld [vmem:[#allocation2 + $0x318] sm:$0xff]
    %v174 = vld [vmem:[#allocation2 + $0x320] sm:$0xff]
    %v175 = vld [vmem:[#allocation2 + $0x328] sm:$0xff]
    %v176 = vld [vmem:[#allocation2 + $0x330] sm:$0xff]
    %v177 = vld [vmem:[#allocation2 + $0x338] sm:$0xff]
    %v178 = vld [vmem:[#allocation2 + $0x340] sm:$0xff]
    %v179 = vld [vmem:[#allocation2 + $0x348] sm:$0xff]
    %v180 = vld [vmem:[#allocation2 + $0x350] sm:$0xff]
    %v181 = vld [vmem:[#allocation2 + $0x358] sm:$0xff]
    %v182 = vld [vmem:[#allocation2 + $0x360] sm:$0xff]
    %v183 = vld [vmem:[#allocation2 + $0x368] sm:$0xff]
    %v184 = vld [vmem:[#allocation2 + $0x370] sm:$0xff]
    %v185 = vld [vmem:[#allocation2 + $0x378] sm:$0xff]
    %v186 = vld [vmem:[#allocation2 + $0x380] sm:$0xff]
    %v187 = vld [vmem:[#allocation2 + $0x388] sm:$0xff]
    %v188 = vld [vmem:[#allocation2 + $0x390] sm:$0xff]
    %v189 = vld [vmem:[#allocation2 + $0x398] sm:$0xff]
    %v190 = vld [vmem:[#allocation2 + $0x3a0] sm:$0xff]
    %v191 = vld [vmem:[#allocation2 + $0x3a8] sm:$0xff]
    %v192 = vld [vmem:[#allocation2 + $0x3b0] sm:$0xff]
    %v193 = vld [vmem:[#allocation2 + $0x3b8] sm:$0xff]
    %v194 = vld [vmem:[#allocation2 + $0x3c0] sm:$0xff]
    %v195 = vld [vmem:[#allocation2 + $0x3c8] sm:$0xff]
    %v196 = vld [vmem:[#allocation2 + $0x3d0] sm:$0xff]
    %v197 = vld [vmem:[#allocation2 + $0x3d8] sm:$0xff]
    %v198 = vld [vmem:[#allocation2 + $0x3e0] sm:$0xff]
    %v199 = vld [vmem:[#allocation2 + $0x3e8] sm:$0xff]
    %v200 = vld [vmem:[#allocation2 + $0x3f0] sm:$0xff]
    %v201 = vld [vmem:[#allocation2 + $0x3f8] sm:$0xff]
    %v202 = vld [vmem:[#allocation2 + $0x400] sm:$0xff]
    %v203 = vld [vmem:[#allocation2 + $0x408] sm:$0xff]
    %v204 = vld [vmem:[#allocation2 + $0x410] sm:$0xff]
    %v205 = vld [vmem:[#allocation2 + $0x418] sm:$0xff]
    %v206 = vld [vmem:[#allocation2 + $0x420] sm:$0xff]
    %v207 = vld [vmem:[#allocation2 + $0x428] sm:$0xff]
    %v208 = vld [vmem:[#allocation2 + $0x430] sm:$0xff]
    %v209 = vld [vmem:[#allocation2 + $0x438] sm:$0xff]
    %v210 = vld [vmem:[#allocation2 + $0x440] sm:$0xff]
    %v211 = vld [vmem:[#allocation2 + $0x448] sm:$0xff]
    %v212 = vld [vmem:[#allocation2 + $0x450] sm:$0xff]
    %v213 = vld [vmem:[#allocation2 + $0x458] sm:$0xff]
    %v214 = vld [vmem:[#allocation2 + $0x460] sm:$0xff]
    %v215 = vld [vmem:[#allocation2 + $0x468] sm:$0xff]
    %v216 = vld [vmem:[#allocation2 + $0x470] sm:$0xff]
    %v217 = vld [vmem:[#allocation2 + $0x478] sm:$0xff]
    %v218 = vld [vmem:[#allocation2 + $0x480] sm:$0xff]
    %v219 = vld [vmem:[#allocation2 + $0x488] sm:$0xff]
    %v220 = vld [vmem:[#allocation2 + $0x490] sm:$0xff]
    %v221 = vld [vmem:[#allocation2 + $0x498] sm:$0xff]
    %v222 = vld [vmem:[#allocation2 + $0x4a0] sm:$0xff]
    %v223 = vld [vmem:[#allocation2 + $0x4a8] sm:$0xff]
    %v224 = vld [vmem:[#allocation2 + $0x4b0] sm:$0xff]
    %v225 = vld [vmem:[#allocation2 + $0x4b8] sm:$0xff]
    %v226 = vld [vmem:[#allocation2 + $0x4c0] sm:$0xff]
    %v227 = vld [vmem:[#allocation2 + $0x4c8] sm:$0xff]
    %v228 = vld [vmem:[#allocation2 + $0x4d0] sm:$0xff]
    %v229 = vld [vmem:[#allocation2 + $0x4d8] sm:$0xff]
    %v230 = vld [vmem:[#allocation2 + $0x4e0] sm:$0xff]
    %v231 = vld [vmem:[#allocation2 + $0x4e8] sm:$0xff]
    %v232 = vld [vmem:[#allocation2 + $0x4f0] sm:$0xff]
    %v233 = vld [vmem:[#allocation2 + $0x4f8] sm:$0xff]
    %v234 = vld [vmem:[#allocation2 + $0x500] sm:$0xff]
    %v235 = vld [vmem:[#allocation2 + $0x508] sm:$0xff]
    %v236 = vld [vmem:[#allocation2 + $0x510] sm:$0xff]
    %v237 = vld [vmem:[#allocation2 + $0x518] sm:$0xff]
    %v238 = vld [vmem:[#allocation2 + $0x520] sm:$0xff]
    %v239 = vld [vmem:[#allocation2 + $0x528] sm:$0xff]
    %v240 = vld [vmem:[#allocation2 + $0x530] sm:$0xff]
    %v241 = vld [vmem:[#allocation2 + $0x538] sm:$0xff]
    %v242 = vld [vmem:[#allocation2 + $0x540] sm:$0xff]
    %v243 = vld [vmem:[#allocation2 + $0x548] sm:$0xff]
    %v244 = vld [vmem:[#allocation2 + $0x550] sm:$0xff]
    %v245 = vld [vmem:[#allocation2 + $0x558] sm:$0xff]
    %v246 = vld [vmem:[#allocation2 + $0x560] sm:$0xff]
    %v247 = vld [vmem:[#allocation2 + $0x568] sm:$0xff]
    %v248 = vld [vmem:[#allocation2 + $0x570] sm:$0xff]
    %v249 = vld [vmem:[#allocation2 + $0x578] sm:$0xff]
    %v250 = vld [vmem:[#allocation2 + $0x580] sm:$0xff]
    %v251 = vld [vmem:[#allocation2 + $0x588] sm:$0xff]
    %v252 = vld [vmem:[#allocation2 + $0x590] sm:$0xff]
    %v253 = vld [vmem:[#allocation2 + $0x598] sm:$0xff]
    %v254 = vld [vmem:[#allocation2 + $0x5a0] sm:$0xff]
    %v255 = vld [vmem:[#allocation2 + $0x5a8] sm:$0xff]
    %v256 = vld [vmem:[#allocation2 + $0x5b0] sm:$0xff]
    %v257 = vld [vmem:[#allocation2 + $0x5b8] sm:$0xff]
    %v258 = vld [vmem:[#allocation2 + $0x5c0] sm:$0xff]
    %v259 = vld [vmem:[#allocation2 + $0x5c8] sm:$0xff]
    %v260 = vld [vmem:[#allocation2 + $0x5d0] sm:$0xff]
    %v261 = vld [vmem:[#allocation2 + $0x5d8] sm:$0xff]
    %v262 = vld [vmem:[#allocation2 + $0x5e0] sm:$0xff]
    %v263 = vld [vmem:[#allocation2 + $0x5e8] sm:$0xff]
    %v264 = vld [vmem:[#allocation2 + $0x5f0] sm:$0xff]
    %v265 = vld [vmem:[#allocation2 + $0x5f8] sm:$0xff]
    %v266 = vld [vmem:[#allocation2 + $0x600] sm:$0xff]
    %v267 = vld [vmem:[#allocation2 + $0x608] sm:$0xff]
    %v268 = vld [vmem:[#allocation2 + $0x610] sm:$0xff]
    %v269 = vld [vmem:[#allocation2 + $0x618] sm:$0xff]
    %v270 = vld [vmem:[#allocation2 + $0x620] sm:$0xff]
    %v271 = vld [vmem:[#allocation2 + $0x628] sm:$0xff]
    %v272 = vld [vmem:[#allocation2 + $0x630] sm:$0xff]
    %v273 = vld [vmem:[#allocation2 + $0x638] sm:$0xff]
    %v274 = vld [vmem:[#allocation2 + $0x640] sm:$0xff]
    %v275 = vld [vmem:[#allocation2 + $0x648] sm:$0xff]
    %v276 = vld [vmem:[#allocation2 + $0x650] sm:$0xff]
    %v277 = vld [vmem:[#allocation2 + $0x658] sm:$0xff]
    %v278 = vld [vmem:[#allocation2 + $0x660] sm:$0xff]
    %v279 = vld [vmem:[#allocation2 + $0x668] sm:$0xff]
    %v280 = vld [vmem:[#allocation2 + $0x670] sm:$0xff]
    %v281 = vld [vmem:[#allocation2 + $0x678] sm:$0xff]
    %v282 = vld [vmem:[#allocation2 + $0x680] sm:$0xff]
    %v283 = vld [vmem:[#allocation2 + $0x688] sm:$0xff]
    %v284 = vld [vmem:[#allocation2 + $0x690] sm:$0xff]
    %v285 = vld [vmem:[#allocation2 + $0x698] sm:$0xff]
    %v286 = vld [vmem:[#allocation2 + $0x6a0] sm:$0xff]
    %v287 = vld [vmem:[#allocation2 + $0x6a8] sm:$0xff]
    %v288 = vld [vmem:[#allocation2 + $0x6b0] sm:$0xff]
    %v289 = vld [vmem:[#allocation2 + $0x6b8] sm:$0xff]
    %v290 = vld [vmem:[#allocation2 + $0x6c0] sm:$0xff]
    %v291 = vld [vmem:[#allocation2 + $0x6c8] sm:$0xff]
    %v292 = vld [vmem:[#allocation2 + $0x6d0] sm:$0xff]
    %v293 = vld [vmem:[#allocation2 + $0x6d8] sm:$0xff]
    %v294 = vld [vmem:[#allocation2 + $0x6e0] sm:$0xff]
    %v295 = vld [vmem:[#allocation2 + $0x6e8] sm:$0xff]
    %v296 = vld [vmem:[#allocation2 + $0x6f0] sm:$0xff]
    %v297 = vld [vmem:[#allocation2 + $0x6f8] sm:$0xff]
    %v298 = vld [vmem:[#allocation2 + $0x700] sm:$0xff]
    %v299 = vld [vmem:[#allocation2 + $0x708] sm:$0xff]
    %v300 = vld [vmem:[#allocation2 + $0x710] sm:$0xff]
    %v301 = vld [vmem:[#allocation2 + $0x718] sm:$0xff]
    %v302 = vld [vmem:[#allocation2 + $0x720] sm:$0xff]
    %v303 = vld [vmem:[#allocation2 + $0x728] sm:$0xff]
    %v304 = vld [vmem:[#allocation2 + $0x730] sm:$0xff]
    %v305 = vld [vmem:[#allocation2 + $0x738] sm:$0xff]
    %v306 = vld [vmem:[#allocation2 + $0x740] sm:$0xff]
    %v307 = vld [vmem:[#allocation2 + $0x748] sm:$0xff]
    %v308 = vld [vmem:[#allocation2 + $0x750] sm:$0xff]
    %v309 = vld [vmem:[#allocation2 + $0x758] sm:$0xff]
    %v310 = vld [vmem:[#allocation2 + $0x760] sm:$0xff]
    %v311 = vld [vmem:[#allocation2 + $0x768] sm:$0xff]
    %v312 = vld [vmem:[#allocation2 + $0x770] sm:$0xff]
    %v313 = vld [vmem:[#allocation2 + $0x778] sm:$0xff]
    %v314 = vld [vmem:[#allocation2 + $0x780] sm:$0xff]
    %v315 = vld [vmem:[#allocation2 + $0x788] sm:$0xff]
    %v316 = vld [vmem:[#allocation2 + $0x790] sm:$0xff]
    %v317 = vld [vmem:[#allocation2 + $0x798] sm:$0xff]
    %v318 = vld [vmem:[#allocation2 + $0x7a0] sm:$0xff]
    %v319 = vld [vmem:[#allocation2 + $0x7a8] sm:$0xff]
    %v320 = vld [vmem:[#allocation2 + $0x7b0] sm:$0xff]
    %v321 = vld [vmem:[#allocation2 + $0x7b8] sm:$0xff]
    %v322 = vld [vmem:[#allocation2 + $0x7c0] sm:$0xff]
    %v323 = vld [vmem:[#allocation2 + $0x7c8] sm:$0xff]
    %v324 = vld [vmem:[#allocation2 + $0x7d0] sm:$0xff]
    %v325 = vld [vmem:[#allocation2 + $0x7d8] sm:$0xff]
    %v326 = vld [vmem:[#allocation2 + $0x7e0] sm:$0xff]
    %v327 = vld [vmem:[#allocation2 + $0x7e8] sm:$0xff]
    %v328 = vld [vmem:[#allocation2 + $0x7f0] sm:$0xff]
    %v329 = vld [vmem:[#allocation2 + $0x7f8] sm:$0xff]
    %v330 = vld [vmem:[#allocation2 + $0x800] sm:$0xff]
    %v331 = vld [vmem:[#allocation2 + $0x808] sm:$0xff]
    %v332 = vld [vmem:[#allocation2 + $0x810] sm:$0xff]
    %v333 = vld [vmem:[#allocation2 + $0x818] sm:$0xff]
    %v334 = vld [vmem:[#allocation2 + $0x820] sm:$0xff]
    %v335 = vld [vmem:[#allocation2 + $0x828] sm:$0xff]
    %v336 = vld [vmem:[#allocation2 + $0x830] sm:$0xff]
    %v337 = vld [vmem:[#allocation2 + $0x838] sm:$0xff]
    %v338 = vld [vmem:[#allocation2 + $0x840] sm:$0xff]
    %v339 = vld [vmem:[#allocation2 + $0x848] sm:$0xff]
    %v340 = vld [vmem:[#allocation2 + $0x850] sm:$0xff]
    %v341 = vld [vmem:[#allocation2 + $0x858] sm:$0xff]
    %v342 = vld [vmem:[#allocation2 + $0x860] sm:$0xff]
    %v343 = vld [vmem:[#allocation2 + $0x868] sm:$0xff]
    %v344 = vld [vmem:[#allocation2 + $0x870] sm:$0xff]
    %v345 = vld [vmem:[#allocation2 + $0x878] sm:$0xff]
    %v346 = vld [vmem:[#allocation2 + $0x880] sm:$0xff]
    %v347 = vld [vmem:[#allocation2 + $0x888] sm:$0xff]
    %v348 = vld [vmem:[#allocation2 + $0x890] sm:$0xff]
    %v349 = vld [vmem:[#allocation2 + $0x898] sm:$0xff]
    %v350 = vld [vmem:[#allocation2 + $0x8a0] sm:$0xff]
    %v351 = vld [vmem:[#allocation2 + $0x8a8] sm:$0xff]
    %v352 = vld [vmem:[#allocation2 + $0x8b0] sm:$0xff]
    %v353 = vld [vmem:[#allocation2 + $0x8b8] sm:$0xff]
    %v354 = vld [vmem:[#allocation2 + $0x8c0] sm:$0xff]
    %v355 = vld [vmem:[#allocation2 + $0x8c8] sm:$0xff]
    %v356 = vld [vmem:[#allocation2 + $0x8d0] sm:$0xff]
    %v357 = vld [vmem:[#allocation2 + $0x8d8] sm:$0xff]
    %v358 = vld [vmem:[#allocation2 + $0x8e0] sm:$0xff]
    %v359 = vld [vmem:[#allocation2 + $0x8e8] sm:$0xff]
    %v360 = vld [vmem:[#allocation2 + $0x8f0] sm:$0xff]
    %v361 = vld [vmem:[#allocation2 + $0x8f8] sm:$0xff]
    %v362 = vld [vmem:[#allocation4] sm:$0xff]
    %v363 = vld [vmem:[#allocation4 + $0x8] sm:$0x1]
    %v366 = vlaneseq
    %v367 = vshrl.u32 %v366, 7
    %v368 = vsub.s32 0, %v367
    %v369 = vrot.slane %v362, %v368
    %v370 = vlaneseq
    %v371 = vshrl.u32 %v370, 7
    %v372 = vsub.s32 1, %v371
    %v373 = vrot.slane %v362, %v372
    %v374 = vlaneseq
    %v375 = vshrl.u32 %v374, 7
    %v376 = vsub.s32 2, %v375
    %v377 = vrot.slane %v362, %v376
    %v378 = vlaneseq
    %v379 = vshrl.u32 %v378, 7
    %v380 = vsub.s32 3, %v379
    %v381 = vrot.slane %v362, %v380
    %v382 = vlaneseq
    %v383 = vshrl.u32 %v382, 7
    %v384 = vsub.s32 4, %v383
    %v385 = vrot.slane %v362, %v384
    %v386 = vlaneseq
    %v387 = vshrl.u32 %v386, 7
    %v388 = vsub.s32 5, %v387
    %v389 = vrot.slane %v362, %v388
    %v390 = vlaneseq
    %v391 = vshrl.u32 %v390, 7
    %v392 = vsub.s32 6, %v391
    %v393 = vrot.slane %v362, %v392
    %v394 = vlaneseq
    %v395 = vshrl.u32 %v394, 7
    %v396 = vsub.s32 7, %v395
    %v397 = vrot.slane %v362, %v396
    %v398 = vlaneseq
    %v399 = vshrl.u32 %v398, 7
    %v400 = vsub.s32 0, %v399
    %v401 = vrot.slane %v363, %v400
    %v413 = vunpack.c.l.s4 1983009808
    %v414 = vunpack.c.0.s8 %v413
    %v415 = vlaneseq
    %v416 = vshrl.u32 %v415, 7
    %v417 = vsub.s32 %v414, %v416
    %v418 = vrot.slane %v73, %v417
    %v419 = vcombine.high %v418, %v418
    %422 = vmatprep.subr.mxu0 %v210
    %423 = vmatpush1.msra.mxu0 %v209
    %424 = vmatprep.subr.mxu0 %v201
    %425 = vmatpush1.msra.mxu0 %v200
    %426 = vmatprep.subr.mxu0 %v192
    %427 = vmatpush1.msra.mxu0 %v191
    %428 = vmatprep.subr.mxu0 %v183
    %429 = vmatpush1.msra.mxu0 %v182
    %430 = vmatprep.subr.mxu0 %v174
    %431 = vmatpush1.msra.mxu0 %v173
    %432 = vmatprep.subr.mxu0 %v165
    %433 = vmatpush1.msra.mxu0 %v164
    %434 = vmatprep.subr.mxu0 %v156
    %435 = vmatpush1.msra.mxu0 %v155
    %436 = vmatprep.subr.mxu0 %v147
    %437 = vmatpush1.msra.mxu0 %v146
    %438 = vmatprep.subr.mxu0 %v138
    %439 = vmatpush1.msra.mxu0 %v137
    %440 = vmatprep.subr.mxu0 %v129
    %441 = vmatpush1.msra.mxu0 %v128
    %442 = vmatprep.subr.mxu0 %v120
    %443 = vmatpush1.msra.mxu0 %v119
    %444 = vmatprep.subr.mxu0 %v111
    %445 = vmatpush1.msra.mxu0 %v110
    %446 = vmatprep.subr.mxu0 %v102
    %447 = vmatpush1.msra.mxu0 %v101
    %448 = vmatprep.subr.mxu0 %v93
    %449 = vmatpush1.msra.mxu0 %v92
    %450 = vmatprep.subr.mxu0 %v84
    %451 = vmatpush1.msra.mxu0 %v83
    %452 = vmatprep.subr.mxu0 %v75
    %453 = vmatpush1.msra.mxu0 %v74
    %454 = vmatprep.subr.mxu0 %v354
    %455 = vmatpush2.msra.mxu0 %v353
    %456 = vmatprep.subr.mxu0 %v345
    %457 = vmatpush2.msra.mxu0 %v344
    %458 = vmatprep.subr.mxu0 %v336
    %459 = vmatpush2.msra.mxu0 %v335
    %460 = vmatprep.subr.mxu0 %v327
    %461 = vmatpush2.msra.mxu0 %v326
    %462 = vmatprep.subr.mxu0 %v318
    %463 = vmatpush2.msra.mxu0 %v317
    %464 = vmatprep.subr.mxu0 %v309
    %465 = vmatpush2.msra.mxu0 %v308
    %466 = vmatprep.subr.mxu0 %v300
    %467 = vmatpush2.msra.mxu0 %v299
    %468 = vmatprep.subr.mxu0 %v291
    %469 = vmatpush2.msra.mxu0 %v290
    %470 = vmatprep.subr.mxu0 %v282
    %471 = vmatpush2.msra.mxu0 %v281
    %472 = vmatprep.subr.mxu0 %v273
    %473 = vmatpush2.msra.mxu0 %v272
    %474 = vmatprep.subr.mxu0 %v264
    %475 = vmatpush2.msra.mxu0 %v263
    %476 = vmatprep.subr.mxu0 %v255
    %477 = vmatpush2.msra.mxu0 %v254
    %478 = vmatprep.subr.mxu0 %v246
    %479 = vmatpush2.msra.mxu0 %v245
    %480 = vmatprep.subr.mxu0 %v237
    %481 = vmatpush2.msra.mxu0 %v236
    %482 = vmatprep.subr.mxu0 %v228
    %483 = vmatpush2.msra.mxu0 %v227
    %484 = vmatprep.subr.mxu0 %v219
    %485 = vmatpush2.msra.mxu0 %v218
    %486 = vmatprep.mubr.f32.mxu0 %v419
    %487 = vmatmul.mubr.f32.gmra.mxu0 %v418
    %v488 = vpop.f32.mrf.mxu0
    %v489 = vadd.f32 %v369, %v488
    %v490 = vpop.f32.mrf.mxu0
    %v491 = vadd.f32 %v373, %v490
    %492 = vdwg.mxu0
    %493 = vmatprep.subr.mxu0 %v212
    %494 = vmatpush1.msra.mxu0 %v211
    %495 = vmatprep.subr.mxu0 %v203
    %496 = vmatpush1.msra.mxu0 %v202
    %497 = vmatprep.subr.mxu0 %v194
    %498 = vmatpush1.msra.mxu0 %v193
    %499 = vmatprep.subr.mxu0 %v185
    %500 = vmatpush1.msra.mxu0 %v184
    %501 = vmatprep.subr.mxu0 %v176
    %502 = vmatpush1.msra.mxu0 %v175
    %503 = vmatprep.subr.mxu0 %v167
    %504 = vmatpush1.msra.mxu0 %v166
    %505 = vmatprep.subr.mxu0 %v158
    %506 = vmatpush1.msra.mxu0 %v157
    %507 = vmatprep.subr.mxu0 %v149
    %508 = vmatpush1.msra.mxu0 %v148
    %509 = vmatprep.subr.mxu0 %v140
    %510 = vmatpush1.msra.mxu0 %v139
    %511 = vmatprep.subr.mxu0 %v131
    %512 = vmatpush1.msra.mxu0 %v130
    %513 = vmatprep.subr.mxu0 %v122
    %514 = vmatpush1.msra.mxu0 %v121
    %515 = vmatprep.subr.mxu0 %v113
    %516 = vmatpush1.msra.mxu0 %v112
    %517 = vmatprep.subr.mxu0 %v104
    %518 = vmatpush1.msra.mxu0 %v103
    %519 = vmatprep.subr.mxu0 %v95
    %520 = vmatpush1.msra.mxu0 %v94
    %521 = vmatprep.subr.mxu0 %v86
    %522 = vmatpush1.msra.mxu0 %v85
    %523 = vmatprep.subr.mxu0 %v77
    %524 = vmatpush1.msra.mxu0 %v76
    %525 = vmatprep.subr.mxu0 %v356
    %526 = vmatpush2.msra.mxu0 %v355
    %527 = vmatprep.subr.mxu0 %v347
    %528 = vmatpush2.msra.mxu0 %v346
    %529 = vmatprep.subr.mxu0 %v338
    %530 = vmatpush2.msra.mxu0 %v337
    %531 = vmatprep.subr.mxu0 %v329
    %532 = vmatpush2.msra.mxu0 %v328
    %533 = vmatprep.subr.mxu0 %v320
    %534 = vmatpush2.msra.mxu0 %v319
    %535 = vmatprep.subr.mxu0 %v311
    %536 = vmatpush2.msra.mxu0 %v310
    %537 = vmatprep.subr.mxu0 %v302
    %538 = vmatpush2.msra.mxu0 %v301
    %539 = vmatprep.subr.mxu0 %v293
    %540 = vmatpush2.msra.mxu0 %v292
    %541 = vmatprep.subr.mxu0 %v284
    %542 = vmatpush2.msra.mxu0 %v283
    %543 = vmatprep.subr.mxu0 %v275
    %544 = vmatpush2.msra.mxu0 %v274
    %545 = vmatprep.subr.mxu0 %v266
    %546 = vmatpush2.msra.mxu0 %v265
    %547 = vmatprep.subr.mxu0 %v257
    %548 = vmatpush2.msra.mxu0 %v256
    %549 = vmatprep.subr.mxu0 %v248
    %550 = vmatpush2.msra.mxu0 %v247
    %551 = vmatprep.subr.mxu0 %v239
    %552 = vmatpush2.msra.mxu0 %v238
    %553 = vmatprep.subr.mxu0 %v230
    %554 = vmatpush2.msra.mxu0 %v229
    %555 = vmatprep.subr.mxu0 %v221
    %556 = vmatpush2.msra.mxu0 %v220
    %557 = vmatprep.mubr.f32.mxu0 %v419
    %558 = vmatmul.mubr.f32.gmra.mxu0 %v418
    %v559 = vpop.f32.mrf.mxu0
    %v560 = vadd.f32 %v377, %v559
    %v561 = vpop.f32.mrf.mxu0
    %v562 = vadd.f32 %v381, %v561
    %563 = vdwg.mxu0
    %564 = vmatprep.subr.mxu0 %v214
    %565 = vmatpush1.msra.mxu0 %v213
    %566 = vmatprep.subr.mxu0 %v205
    %567 = vmatpush1.msra.mxu0 %v204
    %568 = vmatprep.subr.mxu0 %v196
    %569 = vmatpush1.msra.mxu0 %v195
    %570 = vmatprep.subr.mxu0 %v187
    %571 = vmatpush1.msra.mxu0 %v186
    %572 = vmatprep.subr.mxu0 %v178
    %573 = vmatpush1.msra.mxu0 %v177
    %574 = vmatprep.subr.mxu0 %v169
    %575 = vmatpush1.msra.mxu0 %v168
    %576 = vmatprep.subr.mxu0 %v160
    %577 = vmatpush1.msra.mxu0 %v159
    %578 = vmatprep.subr.mxu0 %v151
    %579 = vmatpush1.msra.mxu0 %v150
    %580 = vmatprep.subr.mxu0 %v142
    %581 = vmatpush1.msra.mxu0 %v141
    %582 = vmatprep.subr.mxu0 %v133
    %583 = vmatpush1.msra.mxu0 %v132
    %584 = vmatprep.subr.mxu0 %v124
    %585 = vmatpush1.msra.mxu0 %v123
    %586 = vmatprep.subr.mxu0 %v115
    %587 = vmatpush1.msra.mxu0 %v114
    %588 = vmatprep.subr.mxu0 %v106
    %589 = vmatpush1.msra.mxu0 %v105
    %590 = vmatprep.subr.mxu0 %v97
    %591 = vmatpush1.msra.mxu0 %v96
    %592 = vmatprep.subr.mxu0 %v88
    %593 = vmatpush1.msra.mxu0 %v87
    %594 = vmatprep.subr.mxu0 %v79
    %595 = vmatpush1.msra.mxu0 %v78
    %596 = vmatprep.subr.mxu0 %v358
    %597 = vmatpush2.msra.mxu0 %v357
    %598 = vmatprep.subr.mxu0 %v349
    %599 = vmatpush2.msra.mxu0 %v348
    %600 = vmatprep.subr.mxu0 %v340
    %601 = vmatpush2.msra.mxu0 %v339
    %602 = vmatprep.subr.mxu0 %v331
    %603 = vmatpush2.msra.mxu0 %v330
    %604 = vmatprep.subr.mxu0 %v322
    %605 = vmatpush2.msra.mxu0 %v321
    %606 = vmatprep.subr.mxu0 %v313
    %607 = vmatpush2.msra.mxu0 %v312
    %608 = vmatprep.subr.mxu0 %v304
    %609 = vmatpush2.msra.mxu0 %v303
    %610 = vmatprep.subr.mxu0 %v295
    %611 = vmatpush2.msra.mxu0 %v294
    %612 = vmatprep.subr.mxu0 %v286
    %613 = vmatpush2.msra.mxu0 %v285
    %614 = vmatprep.subr.mxu0 %v277
    %615 = vmatpush2.msra.mxu0 %v276
    %616 = vmatprep.subr.mxu0 %v268
    %617 = vmatpush2.msra.mxu0 %v267
    %618 = vmatprep.subr.mxu0 %v259
    %619 = vmatpush2.msra.mxu0 %v258
    %620 = vmatprep.subr.mxu0 %v250
    %621 = vmatpush2.msra.mxu0 %v249
    %622 = vmatprep.subr.mxu0 %v241
    %623 = vmatpush2.msra.mxu0 %v240
    %624 = vmatprep.subr.mxu0 %v232
    %625 = vmatpush2.msra.mxu0 %v231
    %626 = vmatprep.subr.mxu0 %v223
    %627 = vmatpush2.msra.mxu0 %v222
    %628 = vmatprep.mubr.f32.mxu0 %v419
    %629 = vmatmul.mubr.f32.gmra.mxu0 %v418
    %v630 = vpop.f32.mrf.mxu0
    %v631 = vadd.f32 %v385, %v630
    %v632 = vpop.f32.mrf.mxu0
    %v633 = vadd.f32 %v389, %v632
    %634 = vdwg.mxu0
    %635 = vmatprep.subr.mxu0 %v216
    %636 = vmatpush1.msra.mxu0 %v215
    %637 = vmatprep.subr.mxu0 %v207
    %638 = vmatpush1.msra.mxu0 %v206
    %639 = vmatprep.subr.mxu0 %v198
    %640 = vmatpush1.msra.mxu0 %v197
    %641 = vmatprep.subr.mxu0 %v189
    %642 = vmatpush1.msra.mxu0 %v188
    %643 = vmatprep.subr.mxu0 %v180
    %644 = vmatpush1.msra.mxu0 %v179
    %645 = vmatprep.subr.mxu0 %v171
    %646 = vmatpush1.msra.mxu0 %v170
    %647 = vmatprep.subr.mxu0 %v162
    %648 = vmatpush1.msra.mxu0 %v161
    %649 = vmatprep.subr.mxu0 %v153
    %650 = vmatpush1.msra.mxu0 %v152
    %651 = vmatprep.subr.mxu0 %v144
    %652 = vmatpush1.msra.mxu0 %v143
    %653 = vmatprep.subr.mxu0 %v135
    %654 = vmatpush1.msra.mxu0 %v134
    %655 = vmatprep.subr.mxu0 %v126
    %656 = vmatpush1.msra.mxu0 %v125
    %657 = vmatprep.subr.mxu0 %v117
    %658 = vmatpush1.msra.mxu0 %v116
    %659 = vmatprep.subr.mxu0 %v108
    %660 = vmatpush1.msra.mxu0 %v107
    %661 = vmatprep.subr.mxu0 %v99
    %662 = vmatpush1.msra.mxu0 %v98
    %663 = vmatprep.subr.mxu0 %v90
    %664 = vmatpush1.msra.mxu0 %v89
    %665 = vmatprep.subr.mxu0 %v81
    %666 = vmatpush1.msra.mxu0 %v80
    %667 = vmatprep.subr.mxu0 %v360
    %668 = vmatpush2.msra.mxu0 %v359
    %669 = vmatprep.subr.mxu0 %v351
    %670 = vmatpush2.msra.mxu0 %v350
    %671 = vmatprep.subr.mxu0 %v342
    %672 = vmatpush2.msra.mxu0 %v341
    %673 = vmatprep.subr.mxu0 %v333
    %674 = vmatpush2.msra.mxu0 %v332
    %675 = vmatprep.subr.mxu0 %v324
    %676 = vmatpush2.msra.mxu0 %v323
    %677 = vmatprep.subr.mxu0 %v315
    %678 = vmatpush2.msra.mxu0 %v314
    %679 = vmatprep.subr.mxu0 %v306
    %680 = vmatpush2.msra.mxu0 %v305
    %681 = vmatprep.subr.mxu0 %v297
    %682 = vmatpush2.msra.mxu0 %v296
    %683 = vmatprep.subr.mxu0 %v288
    %684 = vmatpush2.msra.mxu0 %v287
    %685 = vmatprep.subr.mxu0 %v279
    %686 = vmatpush2.msra.mxu0 %v278
    %687 = vmatprep.subr.mxu0 %v270
    %688 = vmatpush2.msra.mxu0 %v269
    %689 = vmatprep.subr.mxu0 %v261
    %690 = vmatpush2.msra.mxu0 %v260
    %691 = vmatprep.subr.mxu0 %v252
    %692 = vmatpush2.msra.mxu0 %v251
    %693 = vmatprep.subr.mxu0 %v243
    %694 = vmatpush2.msra.mxu0 %v242
    %695 = vmatprep.subr.mxu0 %v234
    %696 = vmatpush2.msra.mxu0 %v233
    %697 = vmatprep.subr.mxu0 %v225
    %698 = vmatpush2.msra.mxu0 %v224
    %699 = vmatprep.mubr.f32.mxu0 %v419
    %700 = vmatmul.mubr.f32.gmra.mxu0 %v418
    %v701 = vpop.f32.mrf.mxu0
    %v702 = vadd.f32 %v393, %v701
    %v703 = vpop.f32.mrf.mxu0
    %v704 = vadd.f32 %v397, %v703
    %705 = vdwg.mxu0
    %706 = vmatprep.subr.mxu0 0.0
    %707 = vmatpush1.msra.mxu0 %v217
    %708 = vmatprep.subr.mxu0 0.0
    %709 = vmatpush1.msra.mxu0 %v208
    %710 = vmatprep.subr.mxu0 0.0
    %711 = vmatpush1.msra.mxu0 %v199
    %712 = vmatprep.subr.mxu0 0.0
    %713 = vmatpush1.msra.mxu0 %v190
    %714 = vmatprep.subr.mxu0 0.0
    %715 = vmatpush1.msra.mxu0 %v181
    %716 = vmatprep.subr.mxu0 0.0
    %717 = vmatpush1.msra.mxu0 %v172
    %718 = vmatprep.subr.mxu0 0.0
    %719 = vmatpush1.msra.mxu0 %v163
    %720 = vmatprep.subr.mxu0 0.0
    %721 = vmatpush1.msra.mxu0 %v154
    %722 = vmatprep.subr.mxu0 0.0
    %723 = vmatpush1.msra.mxu0 %v145
    %724 = vmatprep.subr.mxu0 0.0
    %725 = vmatpush1.msra.mxu0 %v136
    %726 = vmatprep.subr.mxu0 0.0
    %727 = vmatpush1.msra.mxu0 %v127
    %728 = vmatprep.subr.mxu0 0.0
    %729 = vmatpush1.msra.mxu0 %v118
    %730 = vmatprep.subr.mxu0 0.0
    %731 = vmatpush1.msra.mxu0 %v109
    %732 = vmatprep.subr.mxu0 0.0
    %733 = vmatpush1.msra.mxu0 %v100
    %734 = vmatprep.subr.mxu0 0.0
    %735 = vmatpush1.msra.mxu0 %v91
    %736 = vmatprep.subr.mxu0 0.0
    %737 = vmatpush1.msra.mxu0 %v82
    %738 = vmatprep.subr.mxu0 0.0
    %739 = vmatpush2.msra.mxu0 %v361
    %740 = vmatprep.subr.mxu0 0.0
    %741 = vmatpush2.msra.mxu0 %v352
    %742 = vmatprep.subr.mxu0 0.0
    %743 = vmatpush2.msra.mxu0 %v343
    %744 = vmatprep.subr.mxu0 0.0
    %745 = vmatpush2.msra.mxu0 %v334
    %746 = vmatprep.subr.mxu0 0.0
    %747 = vmatpush2.msra.mxu0 %v325
    %748 = vmatprep.subr.mxu0 0.0
    %749 = vmatpush2.msra.mxu0 %v316
    %750 = vmatprep.subr.mxu0 0.0
    %751 = vmatpush2.msra.mxu0 %v307
    %752 = vmatprep.subr.mxu0 0.0
    %753 = vmatpush2.msra.mxu0 %v298
    %754 = vmatprep.subr.mxu0 0.0
    %755 = vmatpush2.msra.mxu0 %v289
    %756 = vmatprep.subr.mxu0 0.0
    %757 = vmatpush2.msra.mxu0 %v280
    %758 = vmatprep.subr.mxu0 0.0
    %759 = vmatpush2.msra.mxu0 %v271
    %760 = vmatprep.subr.mxu0 0.0
    %761 = vmatpush2.msra.mxu0 %v262
    %762 = vmatprep.subr.mxu0 0.0
    %763 = vmatpush2.msra.mxu0 %v253
    %764 = vmatprep.subr.mxu0 0.0
    %765 = vmatpush2.msra.mxu0 %v244
    %766 = vmatprep.subr.mxu0 0.0
    %767 = vmatpush2.msra.mxu0 %v235
    %768 = vmatprep.subr.mxu0 0.0
    %769 = vmatpush2.msra.mxu0 %v226
    %770 = vmatprep.mubr.f32.mxu0 %v419
    %771 = vmatmul.mubr.f32.gmra.mxu0 %v418
    %v772 = vpop.f32.mrf.mxu0
    %v773 = vadd.f32 %v401, %v772
    %v774 = vpop.f32.mrf.mxu0
    %775 = vdwg.mxu0
    %vm776 = vcmp.gt.f32.partialorder %v489, 0.0
    %vm777 = vcmp.gt.f32.partialorder %v491, 0.0
    %vm778 = vcmp.gt.f32.partialorder %v560, 0.0
    %vm779 = vcmp.gt.f32.partialorder %v562, 0.0
    %v780 = vmul.f32 %v489, 0.1
    %v781 = vmul.f32 %v491, 0.1
    %v782 = vmul.f32 %v560, 0.1
    %v783 = vmul.f32 %v562, 0.1
    %v784 = vsel %vm776, %v489, %v780
    %v785 = vsel %vm777, %v491, %v781
    %v786 = vsel %vm778, %v560, %v782
    %v787 = vsel %vm779, %v562, %v783
    %v788 = vld [vmem:[#allocation6] sm:$0xff]
    %v789 = vld [vmem:[#allocation6 + $0x8] sm:$0xff]
    %v790 = vld [vmem:[#allocation6 + $0x10] sm:$0xff]
    %v791 = vld [vmem:[#allocation6 + $0x18] sm:$0xff]
    %v792 = vld [vmem:[#allocation6 + $0x20] sm:$0xff]
    %v793 = vld [vmem:[#allocation6 + $0x28] sm:$0xff]
    %v794 = vld [vmem:[#allocation6 + $0x30] sm:$0xff]
    %v795 = vld [vmem:[#allocation6 + $0x38] sm:$0xff]
    %v796 = vld [vmem:[#allocation6 + $0x40] sm:$0xff]
    %v797 = vld [vmem:[#allocation6 + $0x48] sm:$0xff]
    %v798 = vld [vmem:[#allocation6 + $0x50] sm:$0xff]
    %v799 = vld [vmem:[#allocation6 + $0x58] sm:$0xff]
    %v800 = vld [vmem:[#allocation6 + $0x60] sm:$0xff]
    %v801 = vld [vmem:[#allocation6 + $0x68] sm:$0xff]
    %v802 = vld [vmem:[#allocation6 + $0x70] sm:$0xff]
    %v803 = vld [vmem:[#allocation6 + $0x78] sm:$0xff]
    %v804 = vld [vmem:[#allocation6 + $0x80] sm:$0xff]
    %v805 = vld [vmem:[#allocation6 + $0x88] sm:$0xff]
    %v806 = vld [vmem:[#allocation6 + $0x90] sm:$0xff]
    %v807 = vld [vmem:[#allocation6 + $0x98] sm:$0xff]
    %v808 = vld [vmem:[#allocation6 + $0xa0] sm:$0xff]
    %v809 = vld [vmem:[#allocation6 + $0xa8] sm:$0xff]
    %v810 = vld [vmem:[#allocation6 + $0xb0] sm:$0xff]
    %v811 = vld [vmem:[#allocation6 + $0xb8] sm:$0xff]
    %v812 = vld [vmem:[#allocation6 + $0xc0] sm:$0xff]
    %v813 = vld [vmem:[#allocation6 + $0xc8] sm:$0xff]
    %v814 = vld [vmem:[#allocation6 + $0xd0] sm:$0xff]
    %v815 = vld [vmem:[#allocation6 + $0xd8] sm:$0xff]
    %v816 = vld [vmem:[#allocation6 + $0xe0] sm:$0xff]
    %v817 = vld [vmem:[#allocation6 + $0xe8] sm:$0xff]
    %v818 = vld [vmem:[#allocation6 + $0xf0] sm:$0xff]
    %v819 = vld [vmem:[#allocation6 + $0xf8] sm:$0xff]
    %v820 = vld [vmem:[#allocation6 + $0x100] sm:$0xff]
    %v821 = vld [vmem:[#allocation6 + $0x108] sm:$0xff]
    %v822 = vld [vmem:[#allocation6 + $0x110] sm:$0xff]
    %v823 = vld [vmem:[#allocation6 + $0x118] sm:$0xff]
    %v824 = vld [vmem:[#allocation6 + $0x120] sm:$0xff]
    %v825 = vld [vmem:[#allocation6 + $0x128] sm:$0xff]
    %v826 = vld [vmem:[#allocation6 + $0x130] sm:$0xff]
    %v827 = vld [vmem:[#allocation6 + $0x138] sm:$0xff]
    %v828 = vld [vmem:[#allocation6 + $0x140] sm:$0xff]
    %v829 = vld [vmem:[#allocation6 + $0x148] sm:$0xff]
    %v830 = vld [vmem:[#allocation6 + $0x150] sm:$0xff]
    %v831 = vld [vmem:[#allocation6 + $0x158] sm:$0xff]
    %v832 = vld [vmem:[#allocation6 + $0x160] sm:$0xff]
    %v833 = vld [vmem:[#allocation6 + $0x168] sm:$0xff]
    %v834 = vld [vmem:[#allocation6 + $0x170] sm:$0xff]
    %v835 = vld [vmem:[#allocation6 + $0x178] sm:$0xff]
    %v836 = vld [vmem:[#allocation6 + $0x180] sm:$0xff]
    %v837 = vld [vmem:[#allocation6 + $0x188] sm:$0xff]
    %v838 = vld [vmem:[#allocation6 + $0x190] sm:$0xff]
    %v839 = vld [vmem:[#allocation6 + $0x198] sm:$0xff]
    %v840 = vld [vmem:[#allocation6 + $0x1a0] sm:$0xff]
    %v841 = vld [vmem:[#allocation6 + $0x1a8] sm:$0xff]
    %v842 = vld [vmem:[#allocation6 + $0x1b0] sm:$0xff]
    %v843 = vld [vmem:[#allocation6 + $0x1b8] sm:$0xff]
    %v844 = vld [vmem:[#allocation6 + $0x1c0] sm:$0xff]
    %v845 = vld [vmem:[#allocation6 + $0x1c8] sm:$0xff]
    %v846 = vld [vmem:[#allocation6 + $0x1d0] sm:$0xff]
    %v847 = vld [vmem:[#allocation6 + $0x1d8] sm:$0xff]
    %v848 = vld [vmem:[#allocation6 + $0x1e0] sm:$0xff]
    %v849 = vld [vmem:[#allocation6 + $0x1e8] sm:$0xff]
    %v850 = vld [vmem:[#allocation6 + $0x1f0] sm:$0xff]
    %v851 = vld [vmem:[#allocation6 + $0x1f8] sm:$0xff]
    %v852 = vld [vmem:[#allocation6 + $0x200] sm:$0xff]
    %v853 = vld [vmem:[#allocation6 + $0x208] sm:$0xff]
    %v854 = vld [vmem:[#allocation6 + $0x210] sm:$0xff]
    %v855 = vld [vmem:[#allocation6 + $0x218] sm:$0xff]
    %v856 = vld [vmem:[#allocation6 + $0x220] sm:$0xff]
    %v857 = vld [vmem:[#allocation6 + $0x228] sm:$0xff]
    %v858 = vld [vmem:[#allocation6 + $0x230] sm:$0xff]
    %v859 = vld [vmem:[#allocation6 + $0x238] sm:$0xff]
    %v860 = vld [vmem:[#allocation6 + $0x240] sm:$0xff]
    %v861 = vld [vmem:[#allocation6 + $0x248] sm:$0xff]
    %v862 = vld [vmem:[#allocation6 + $0x250] sm:$0xff]
    %v863 = vld [vmem:[#allocation6 + $0x258] sm:$0xff]
    %v864 = vld [vmem:[#allocation6 + $0x260] sm:$0xff]
    %v865 = vld [vmem:[#allocation6 + $0x268] sm:$0xff]
    %v866 = vld [vmem:[#allocation6 + $0x270] sm:$0xff]
    %v867 = vld [vmem:[#allocation6 + $0x278] sm:$0xff]
    %v868 = vld [vmem:[#allocation6 + $0x280] sm:$0xff]
    %v869 = vld [vmem:[#allocation6 + $0x288] sm:$0xff]
    %v870 = vld [vmem:[#allocation6 + $0x290] sm:$0xff]
    %v871 = vld [vmem:[#allocation6 + $0x298] sm:$0xff]
    %v872 = vld [vmem:[#allocation6 + $0x2a0] sm:$0xff]
    %v873 = vld [vmem:[#allocation6 + $0x2a8] sm:$0xff]
    %v874 = vld [vmem:[#allocation6 + $0x2b0] sm:$0xff]
    %v875 = vld [vmem:[#allocation6 + $0x2b8] sm:$0xff]
    %v876 = vld [vmem:[#allocation6 + $0x2c0] sm:$0xff]
    %v877 = vld [vmem:[#allocation6 + $0x2c8] sm:$0xff]
    %v878 = vld [vmem:[#allocation6 + $0x2d0] sm:$0xff]
    %v879 = vld [vmem:[#allocation6 + $0x2d8] sm:$0xff]
    %v880 = vld [vmem:[#allocation6 + $0x2e0] sm:$0xff]
    %v881 = vld [vmem:[#allocation6 + $0x2e8] sm:$0xff]
    %v882 = vld [vmem:[#allocation6 + $0x2f0] sm:$0xff]
    %v883 = vld [vmem:[#allocation6 + $0x2f8] sm:$0xff]
    %v884 = vld [vmem:[#allocation6 + $0x300] sm:$0xff]
    %v885 = vld [vmem:[#allocation6 + $0x308] sm:$0xff]
    %v886 = vld [vmem:[#allocation6 + $0x310] sm:$0xff]
    %v887 = vld [vmem:[#allocation6 + $0x318] sm:$0xff]
    %v888 = vld [vmem:[#allocation6 + $0x320] sm:$0xff]
    %v889 = vld [vmem:[#allocation6 + $0x328] sm:$0xff]
    %v890 = vld [vmem:[#allocation6 + $0x330] sm:$0xff]
    %v891 = vld [vmem:[#allocation6 + $0x338] sm:$0xff]
    %v892 = vld [vmem:[#allocation6 + $0x340] sm:$0xff]
    %v893 = vld [vmem:[#allocation6 + $0x348] sm:$0xff]
    %v894 = vld [vmem:[#allocation6 + $0x350] sm:$0xff]
    %v895 = vld [vmem:[#allocation6 + $0x358] sm:$0xff]
    %v896 = vld [vmem:[#allocation6 + $0x360] sm:$0xff]
    %v897 = vld [vmem:[#allocation6 + $0x368] sm:$0xff]
    %v898 = vld [vmem:[#allocation6 + $0x370] sm:$0xff]
    %v899 = vld [vmem:[#allocation6 + $0x378] sm:$0xff]
    %v900 = vld [vmem:[#allocation6 + $0x380] sm:$0xff]
    %v901 = vld [vmem:[#allocation6 + $0x388] sm:$0xff]
    %v902 = vld [vmem:[#allocation6 + $0x390] sm:$0xff]
    %v903 = vld [vmem:[#allocation6 + $0x398] sm:$0xff]
    %v904 = vld [vmem:[#allocation6 + $0x3a0] sm:$0xff]
    %v905 = vld [vmem:[#allocation6 + $0x3a8] sm:$0xff]
    %v906 = vld [vmem:[#allocation6 + $0x3b0] sm:$0xff]
    %v907 = vld [vmem:[#allocation6 + $0x3b8] sm:$0xff]
    %v908 = vld [vmem:[#allocation6 + $0x3c0] sm:$0xff]
    %v909 = vld [vmem:[#allocation6 + $0x3c8] sm:$0xff]
    %v910 = vld [vmem:[#allocation6 + $0x3d0] sm:$0xff]
    %v911 = vld [vmem:[#allocation6 + $0x3d8] sm:$0xff]
    %v912 = vld [vmem:[#allocation6 + $0x3e0] sm:$0xff]
    %v913 = vld [vmem:[#allocation6 + $0x3e8] sm:$0xff]
    %v914 = vld [vmem:[#allocation6 + $0x3f0] sm:$0xff]
    %v915 = vld [vmem:[#allocation6 + $0x3f8] sm:$0xff]
    %v916 = vld [vmem:[#allocation6 + $0x400] sm:$0xff]
    %v917 = vld [vmem:[#allocation6 + $0x408] sm:$0xff]
    %v918 = vld [vmem:[#allocation6 + $0x410] sm:$0xff]
    %v919 = vld [vmem:[#allocation6 + $0x418] sm:$0xff]
    %v920 = vld [vmem:[#allocation6 + $0x420] sm:$0xff]
    %v921 = vld [vmem:[#allocation6 + $0x428] sm:$0xff]
    %v922 = vld [vmem:[#allocation6 + $0x430] sm:$0xff]
    %v923 = vld [vmem:[#allocation6 + $0x438] sm:$0xff]
    %v924 = vld [vmem:[#allocation6 + $0x440] sm:$0xff]
    %v925 = vld [vmem:[#allocation6 + $0x448] sm:$0xff]
    %v926 = vld [vmem:[#allocation6 + $0x450] sm:$0xff]
    %v927 = vld [vmem:[#allocation6 + $0x458] sm:$0xff]
    %v928 = vld [vmem:[#allocation6 + $0x460] sm:$0xff]
    %v929 = vld [vmem:[#allocation6 + $0x468] sm:$0xff]
    %v930 = vld [vmem:[#allocation6 + $0x470] sm:$0xff]
    %v931 = vld [vmem:[#allocation6 + $0x478] sm:$0xff]
    %v932 = vld [vmem:[#allocation6 + $0x480] sm:$0xff]
    %v933 = vld [vmem:[#allocation6 + $0x488] sm:$0xff]
    %v934 = vld [vmem:[#allocation6 + $0x490] sm:$0xff]
    %v935 = vld [vmem:[#allocation6 + $0x498] sm:$0xff]
    %v936 = vld [vmem:[#allocation6 + $0x4a0] sm:$0xff]
    %v937 = vld [vmem:[#allocation6 + $0x4a8] sm:$0xff]
    %v938 = vld [vmem:[#allocation6 + $0x4b0] sm:$0xff]
    %v939 = vld [vmem:[#allocation6 + $0x4b8] sm:$0xff]
    %v940 = vld [vmem:[#allocation6 + $0x4c0] sm:$0xff]
    %v941 = vld [vmem:[#allocation6 + $0x4c8] sm:$0xff]
    %v942 = vld [vmem:[#allocation6 + $0x4d0] sm:$0xff]
    %v943 = vld [vmem:[#allocation6 + $0x4d8] sm:$0xff]
    %v944 = vld [vmem:[#allocation6 + $0x4e0] sm:$0xff]
    %v945 = vld [vmem:[#allocation6 + $0x4e8] sm:$0xff]
    %v946 = vld [vmem:[#allocation6 + $0x4f0] sm:$0xff]
    %v947 = vld [vmem:[#allocation6 + $0x4f8] sm:$0xff]
    %v948 = vld [vmem:[#allocation6 + $0x500] sm:$0xff]
    %v949 = vld [vmem:[#allocation6 + $0x508] sm:$0xff]
    %v950 = vld [vmem:[#allocation6 + $0x510] sm:$0xff]
    %v951 = vld [vmem:[#allocation6 + $0x518] sm:$0xff]
    %v952 = vld [vmem:[#allocation6 + $0x520] sm:$0xff]
    %v953 = vld [vmem:[#allocation6 + $0x528] sm:$0xff]
    %v954 = vld [vmem:[#allocation6 + $0x530] sm:$0xff]
    %v955 = vld [vmem:[#allocation6 + $0x538] sm:$0xff]
    %v956 = vld [vmem:[#allocation6 + $0x540] sm:$0xff]
    %v957 = vld [vmem:[#allocation6 + $0x548] sm:$0xff]
    %v958 = vld [vmem:[#allocation6 + $0x550] sm:$0xff]
    %v959 = vld [vmem:[#allocation6 + $0x558] sm:$0xff]
    %v960 = vld [vmem:[#allocation6 + $0x560] sm:$0xff]
    %v961 = vld [vmem:[#allocation6 + $0x568] sm:$0xff]
    %v962 = vld [vmem:[#allocation6 + $0x570] sm:$0xff]
    %v963 = vld [vmem:[#allocation6 + $0x578] sm:$0xff]
    %v964 = vld [vmem:[#allocation6 + $0x580] sm:$0xff]
    %v965 = vld [vmem:[#allocation6 + $0x588] sm:$0xff]
    %v966 = vld [vmem:[#allocation6 + $0x590] sm:$0xff]
    %v967 = vld [vmem:[#allocation6 + $0x598] sm:$0xff]
    %v968 = vld [vmem:[#allocation6 + $0x5a0] sm:$0xff]
    %v969 = vld [vmem:[#allocation6 + $0x5a8] sm:$0xff]
    %v970 = vld [vmem:[#allocation6 + $0x5b0] sm:$0xff]
    %v971 = vld [vmem:[#allocation6 + $0x5b8] sm:$0xff]
    %v972 = vld [vmem:[#allocation6 + $0x5c0] sm:$0xff]
    %v973 = vld [vmem:[#allocation6 + $0x5c8] sm:$0xff]
    %v974 = vld [vmem:[#allocation6 + $0x5d0] sm:$0xff]
    %v975 = vld [vmem:[#allocation6 + $0x5d8] sm:$0xff]
    %v976 = vld [vmem:[#allocation6 + $0x5e0] sm:$0xff]
    %v977 = vld [vmem:[#allocation6 + $0x5e8] sm:$0xff]
    %v978 = vld [vmem:[#allocation6 + $0x5f0] sm:$0xff]
    %v979 = vld [vmem:[#allocation6 + $0x5f8] sm:$0xff]
    %v980 = vld [vmem:[#allocation6 + $0x600] sm:$0xff]
    %v981 = vld [vmem:[#allocation6 + $0x608] sm:$0xff]
    %v982 = vld [vmem:[#allocation6 + $0x610] sm:$0xff]
    %v983 = vld [vmem:[#allocation6 + $0x618] sm:$0xff]
    %v984 = vld [vmem:[#allocation6 + $0x620] sm:$0xff]
    %v985 = vld [vmem:[#allocation6 + $0x628] sm:$0xff]
    %v986 = vld [vmem:[#allocation6 + $0x630] sm:$0xff]
    %v987 = vld [vmem:[#allocation6 + $0x638] sm:$0xff]
    %v988 = vld [vmem:[#allocation6 + $0x640] sm:$0xff]
    %v989 = vld [vmem:[#allocation6 + $0x648] sm:$0xff]
    %v990 = vld [vmem:[#allocation6 + $0x650] sm:$0xff]
    %v991 = vld [vmem:[#allocation6 + $0x658] sm:$0xff]
    %v992 = vld [vmem:[#allocation6 + $0x660] sm:$0xff]
    %v993 = vld [vmem:[#allocation6 + $0x668] sm:$0xff]
    %v994 = vld [vmem:[#allocation6 + $0x670] sm:$0xff]
    %v995 = vld [vmem:[#allocation6 + $0x678] sm:$0xff]
    %v996 = vld [vmem:[#allocation6 + $0x680] sm:$0xff]
    %v997 = vld [vmem:[#allocation6 + $0x688] sm:$0xff]
    %v998 = vld [vmem:[#allocation6 + $0x690] sm:$0xff]
    %v999 = vld [vmem:[#allocation6 + $0x698] sm:$0xff]
    %v1000 = vld [vmem:[#allocation6 + $0x6a0] sm:$0xff]
    %v1001 = vld [vmem:[#allocation6 + $0x6a8] sm:$0xff]
    %v1002 = vld [vmem:[#allocation6 + $0x6b0] sm:$0xff]
    %v1003 = vld [vmem:[#allocation6 + $0x6b8] sm:$0xff]
    %v1004 = vld [vmem:[#allocation6 + $0x6c0] sm:$0xff]
    %v1005 = vld [vmem:[#allocation6 + $0x6c8] sm:$0xff]
    %v1006 = vld [vmem:[#allocation6 + $0x6d0] sm:$0xff]
    %v1007 = vld [vmem:[#allocation6 + $0x6d8] sm:$0xff]
    %v1008 = vld [vmem:[#allocation6 + $0x6e0] sm:$0xff]
    %v1009 = vld [vmem:[#allocation6 + $0x6e8] sm:$0xff]
    %v1010 = vld [vmem:[#allocation6 + $0x6f0] sm:$0xff]
    %v1011 = vld [vmem:[#allocation6 + $0x6f8] sm:$0xff]
    %v1012 = vld [vmem:[#allocation6 + $0x700] sm:$0xff]
    %v1013 = vld [vmem:[#allocation6 + $0x708] sm:$0xff]
    %v1014 = vld [vmem:[#allocation6 + $0x710] sm:$0xff]
    %v1015 = vld [vmem:[#allocation6 + $0x718] sm:$0xff]
    %v1016 = vld [vmem:[#allocation6 + $0x720] sm:$0xff]
    %v1017 = vld [vmem:[#allocation6 + $0x728] sm:$0xff]
    %v1018 = vld [vmem:[#allocation6 + $0x730] sm:$0xff]
    %v1019 = vld [vmem:[#allocation6 + $0x738] sm:$0xff]
    %v1020 = vld [vmem:[#allocation6 + $0x740] sm:$0xff]
    %v1021 = vld [vmem:[#allocation6 + $0x748] sm:$0xff]
    %v1022 = vld [vmem:[#allocation6 + $0x750] sm:$0xff]
    %v1023 = vld [vmem:[#allocation6 + $0x758] sm:$0xff]
    %v1024 = vld [vmem:[#allocation6 + $0x760] sm:$0xff]
    %v1025 = vld [vmem:[#allocation6 + $0x768] sm:$0xff]
    %v1026 = vld [vmem:[#allocation6 + $0x770] sm:$0xff]
    %v1027 = vld [vmem:[#allocation6 + $0x778] sm:$0xff]
    %v1028 = vld [vmem:[#allocation6 + $0x780] sm:$0xff]
    %v1029 = vld [vmem:[#allocation6 + $0x788] sm:$0xff]
    %v1030 = vld [vmem:[#allocation6 + $0x790] sm:$0xff]
    %v1031 = vld [vmem:[#allocation6 + $0x798] sm:$0xff]
    %v1032 = vld [vmem:[#allocation6 + $0x7a0] sm:$0xff]
    %v1033 = vld [vmem:[#allocation6 + $0x7a8] sm:$0xff]
    %v1034 = vld [vmem:[#allocation6 + $0x7b0] sm:$0xff]
    %v1035 = vld [vmem:[#allocation6 + $0x7b8] sm:$0xff]
    %v1036 = vld [vmem:[#allocation6 + $0x7c0] sm:$0xff]
    %v1037 = vld [vmem:[#allocation6 + $0x7c8] sm:$0xff]
    %v1038 = vld [vmem:[#allocation6 + $0x7d0] sm:$0xff]
    %v1039 = vld [vmem:[#allocation6 + $0x7d8] sm:$0xff]
    %v1040 = vld [vmem:[#allocation6 + $0x7e0] sm:$0xff]
    %v1041 = vld [vmem:[#allocation6 + $0x7e8] sm:$0xff]
    %v1042 = vld [vmem:[#allocation6 + $0x7f0] sm:$0xff]
    %v1043 = vld [vmem:[#allocation6 + $0x7f8] sm:$0xff]
    %1044 = vmatprep.subr.mxu0 %v849
    %1045 = vmatpush1.msra.mxu0 %v848
    %1046 = vmatprep.subr.mxu0 %v845
    %1047 = vmatpush1.msra.mxu0 %v844
    %1048 = vmatprep.subr.mxu0 %v841
    %1049 = vmatpush1.msra.mxu0 %v840
    %1050 = vmatprep.subr.mxu0 %v837
    %1051 = vmatpush1.msra.mxu0 %v836
    %1052 = vmatprep.subr.mxu0 %v833
    %1053 = vmatpush1.msra.mxu0 %v832
    %1054 = vmatprep.subr.mxu0 %v829
    %1055 = vmatpush1.msra.mxu0 %v828
    %1056 = vmatprep.subr.mxu0 %v825
    %1057 = vmatpush1.msra.mxu0 %v824
    %1058 = vmatprep.subr.mxu0 %v821
    %1059 = vmatpush1.msra.mxu0 %v820
    %1060 = vmatprep.subr.mxu0 %v817
    %1061 = vmatpush1.msra.mxu0 %v816
    %1062 = vmatprep.subr.mxu0 %v813
    %1063 = vmatpush1.msra.mxu0 %v812
    %1064 = vmatprep.subr.mxu0 %v809
    %1065 = vmatpush1.msra.mxu0 %v808
    %1066 = vmatprep.subr.mxu0 %v805
    %1067 = vmatpush1.msra.mxu0 %v804
    %1068 = vmatprep.subr.mxu0 %v801
    %1069 = vmatpush1.msra.mxu0 %v800
    %1070 = vmatprep.subr.mxu0 %v797
    %1071 = vmatpush1.msra.mxu0 %v796
    %1072 = vmatprep.subr.mxu0 %v793
    %1073 = vmatpush1.msra.mxu0 %v792
    %1074 = vmatprep.subr.mxu0 %v789
    %1075 = vmatpush1.msra.mxu0 %v788
    %1076 = vmatprep.subr.mxu0 %v913
    %1077 = vmatpush2.msra.mxu0 %v912
    %1078 = vmatprep.subr.mxu0 %v909
    %1079 = vmatpush2.msra.mxu0 %v908
    %1080 = vmatprep.subr.mxu0 %v905
    %1081 = vmatpush2.msra.mxu0 %v904
    %1082 = vmatprep.subr.mxu0 %v901
    %1083 = vmatpush2.msra.mxu0 %v900
    %1084 = vmatprep.subr.mxu0 %v897
    %1085 = vmatpush2.msra.mxu0 %v896
    %1086 = vmatprep.subr.mxu0 %v893
    %1087 = vmatpush2.msra.mxu0 %v892
    %1088 = vmatprep.subr.mxu0 %v889
    %1089 = vmatpush2.msra.mxu0 %v888
    %1090 = vmatprep.subr.mxu0 %v885
    %1091 = vmatpush2.msra.mxu0 %v884
    %1092 = vmatprep.subr.mxu0 %v881
    %1093 = vmatpush2.msra.mxu0 %v880
    %1094 = vmatprep.subr.mxu0 %v877
    %1095 = vmatpush2.msra.mxu0 %v876
    %1096 = vmatprep.subr.mxu0 %v873
    %1097 = vmatpush2.msra.mxu0 %v872
    %1098 = vmatprep.subr.mxu0 %v869
    %1099 = vmatpush2.msra.mxu0 %v868
    %1100 = vmatprep.subr.mxu0 %v865
    %1101 = vmatpush2.msra.mxu0 %v864
    %1102 = vmatprep.subr.mxu0 %v861
    %1103 = vmatpush2.msra.mxu0 %v860
    %1104 = vmatprep.subr.mxu0 %v857
    %1105 = vmatpush2.msra.mxu0 %v856
    %1106 = vmatprep.subr.mxu0 %v853
    %1107 = vmatpush2.msra.mxu0 %v852
    %1108 = vmatprep.mubr.f32.mxu0 %v785
    %1109 = vmatmul.mubr.f32.gmra.mxu0 %v784
    %v1110 = vpop.f32.mrf.mxu0
    %v1111 = vadd.f32 %v631, %v1110
    %v1112 = vpop.f32.mrf.mxu0
    %v1113 = vadd.f32 %v633, %v1112
    %1114 = vdwg.mxu0
    %1115 = vmatprep.subr.mxu0 %v977
    %1116 = vmatpush1.msra.mxu0 %v976
    %1117 = vmatprep.subr.mxu0 %v973
    %1118 = vmatpush1.msra.mxu0 %v972
    %1119 = vmatprep.subr.mxu0 %v969
    %1120 = vmatpush1.msra.mxu0 %v968
    %1121 = vmatprep.subr.mxu0 %v965
    %1122 = vmatpush1.msra.mxu0 %v964
    %1123 = vmatprep.subr.mxu0 %v961
    %1124 = vmatpush1.msra.mxu0 %v960
    %1125 = vmatprep.subr.mxu0 %v957
    %1126 = vmatpush1.msra.mxu0 %v956
    %1127 = vmatprep.subr.mxu0 %v953
    %1128 = vmatpush1.msra.mxu0 %v952
    %1129 = vmatprep.subr.mxu0 %v949
    %1130 = vmatpush1.msra.mxu0 %v948
    %1131 = vmatprep.subr.mxu0 %v945
    %1132 = vmatpush1.msra.mxu0 %v944
    %1133 = vmatprep.subr.mxu0 %v941
    %1134 = vmatpush1.msra.mxu0 %v940
    %1135 = vmatprep.subr.mxu0 %v937
    %1136 = vmatpush1.msra.mxu0 %v936
    %1137 = vmatprep.subr.mxu0 %v933
    %1138 = vmatpush1.msra.mxu0 %v932
    %1139 = vmatprep.subr.mxu0 %v929
    %1140 = vmatpush1.msra.mxu0 %v928
    %1141 = vmatprep.subr.mxu0 %v925
    %1142 = vmatpush1.msra.mxu0 %v924
    %1143 = vmatprep.subr.mxu0 %v921
    %1144 = vmatpush1.msra.mxu0 %v920
    %1145 = vmatprep.subr.mxu0 %v917
    %1146 = vmatpush1.msra.mxu0 %v916
    %1147 = vmatprep.subr.mxu0 %v1041
    %1148 = vmatpush2.msra.mxu0 %v1040
    %1149 = vmatprep.subr.mxu0 %v1037
    %1150 = vmatpush2.msra.mxu0 %v1036
    %1151 = vmatprep.subr.mxu0 %v1033
    %1152 = vmatpush2.msra.mxu0 %v1032
    %1153 = vmatprep.subr.mxu0 %v1029
    %1154 = vmatpush2.msra.mxu0 %v1028
    %1155 = vmatprep.subr.mxu0 %v1025
    %1156 = vmatpush2.msra.mxu0 %v1024
    %1157 = vmatprep.subr.mxu0 %v1021
    %1158 = vmatpush2.msra.mxu0 %v1020
    %1159 = vmatprep.subr.mxu0 %v1017
    %1160 = vmatpush2.msra.mxu0 %v1016
    %1161 = vmatprep.subr.mxu0 %v1013
    %1162 = vmatpush2.msra.mxu0 %v1012
    %1163 = vmatprep.subr.mxu0 %v1009
    %1164 = vmatpush2.msra.mxu0 %v1008
    %1165 = vmatprep.subr.mxu0 %v1005
    %1166 = vmatpush2.msra.mxu0 %v1004
    %1167 = vmatprep.subr.mxu0 %v1001
    %1168 = vmatpush2.msra.mxu0 %v1000
    %1169 = vmatprep.subr.mxu0 %v997
    %1170 = vmatpush2.msra.mxu0 %v996
    %1171 = vmatprep.subr.mxu0 %v993
    %1172 = vmatpush2.msra.mxu0 %v992
    %1173 = vmatprep.subr.mxu0 %v989
    %1174 = vmatpush2.msra.mxu0 %v988
    %1175 = vmatprep.subr.mxu0 %v985
    %1176 = vmatpush2.msra.mxu0 %v984
    %1177 = vmatprep.subr.mxu0 %v981
    %1178 = vmatpush2.msra.mxu0 %v980
    %1179 = vmatprep.mubr.f32.mxu0 %v787
    %1180 = vmatmul.mubr.f32.gmra.mxu0 %v786
    %v1181 = vpop.f32.mrf.mxu0
    %v1182 = vadd.f32 %v1111, %v1181
    %v1183 = vpop.f32.mrf.mxu0
    %v1184 = vadd.f32 %v1113, %v1183
    %1185 = vdwg.mxu0
    %1186 = vmatprep.subr.mxu0 %v851
    %1187 = vmatpush1.msra.mxu0 %v850
    %1188 = vmatprep.subr.mxu0 %v847
    %1189 = vmatpush1.msra.mxu0 %v846
    %1190 = vmatprep.subr.mxu0 %v843
    %1191 = vmatpush1.msra.mxu0 %v842
    %1192 = vmatprep.subr.mxu0 %v839
    %1193 = vmatpush1.msra.mxu0 %v838
    %1194 = vmatprep.subr.mxu0 %v835
    %1195 = vmatpush1.msra.mxu0 %v834
    %1196 = vmatprep.subr.mxu0 %v831
    %1197 = vmatpush1.msra.mxu0 %v830
    %1198 = vmatprep.subr.mxu0 %v827
    %1199 = vmatpush1.msra.mxu0 %v826
    %1200 = vmatprep.subr.mxu0 %v823
    %1201 = vmatpush1.msra.mxu0 %v822
    %1202 = vmatprep.subr.mxu0 %v819
    %1203 = vmatpush1.msra.mxu0 %v818
    %1204 = vmatprep.subr.mxu0 %v815
    %1205 = vmatpush1.msra.mxu0 %v814
    %1206 = vmatprep.subr.mxu0 %v811
    %1207 = vmatpush1.msra.mxu0 %v810
    %1208 = vmatprep.subr.mxu0 %v807
    %1209 = vmatpush1.msra.mxu0 %v806
    %1210 = vmatprep.subr.mxu0 %v803
    %1211 = vmatpush1.msra.mxu0 %v802
    %1212 = vmatprep.subr.mxu0 %v799
    %1213 = vmatpush1.msra.mxu0 %v798
    %1214 = vmatprep.subr.mxu0 %v795
    %1215 = vmatpush1.msra.mxu0 %v794
    %1216 = vmatprep.subr.mxu0 %v791
    %1217 = vmatpush1.msra.mxu0 %v790
    %1218 = vmatprep.subr.mxu0 %v915
    %1219 = vmatpush2.msra.mxu0 %v914
    %1220 = vmatprep.subr.mxu0 %v911
    %1221 = vmatpush2.msra.mxu0 %v910
    %1222 = vmatprep.subr.mxu0 %v907
    %1223 = vmatpush2.msra.mxu0 %v906
    %1224 = vmatprep.subr.mxu0 %v903
    %1225 = vmatpush2.msra.mxu0 %v902
    %1226 = vmatprep.subr.mxu0 %v899
    %1227 = vmatpush2.msra.mxu0 %v898
    %1228 = vmatprep.subr.mxu0 %v895
    %1229 = vmatpush2.msra.mxu0 %v894
    %1230 = vmatprep.subr.mxu0 %v891
    %1231 = vmatpush2.msra.mxu0 %v890
    %1232 = vmatprep.subr.mxu0 %v887
    %1233 = vmatpush2.msra.mxu0 %v886
    %1234 = vmatprep.subr.mxu0 %v883
    %1235 = vmatpush2.msra.mxu0 %v882
    %1236 = vmatprep.subr.mxu0 %v879
    %1237 = vmatpush2.msra.mxu0 %v878
    %1238 = vmatprep.subr.mxu0 %v875
    %1239 = vmatpush2.msra.mxu0 %v874
    %1240 = vmatprep.subr.mxu0 %v871
    %1241 = vmatpush2.msra.mxu0 %v870
    %1242 = vmatprep.subr.mxu0 %v867
    %1243 = vmatpush2.msra.mxu0 %v866
    %1244 = vmatprep.subr.mxu0 %v863
    %1245 = vmatpush2.msra.mxu0 %v862
    %1246 = vmatprep.subr.mxu0 %v859
    %1247 = vmatpush2.msra.mxu0 %v858
    %1248 = vmatprep.subr.mxu0 %v855
    %1249 = vmatpush2.msra.mxu0 %v854
    %1250 = vmatprep.mubr.f32.mxu0 %v785
    %1251 = vmatmul.mubr.f32.gmra.mxu0 %v784
    %v1252 = vpop.f32.mrf.mxu0
    %v1253 = vadd.f32 %v702, %v1252
    %v1254 = vpop.f32.mrf.mxu0
    %v1255 = vadd.f32 %v704, %v1254
    %1256 = vdwg.mxu0
    %1257 = vmatprep.subr.mxu0 %v979
    %1258 = vmatpush1.msra.mxu0 %v978
    %1259 = vmatprep.subr.mxu0 %v975
    %1260 = vmatpush1.msra.mxu0 %v974
    %1261 = vmatprep.subr.mxu0 %v971
    %1262 = vmatpush1.msra.mxu0 %v970
    %1263 = vmatprep.subr.mxu0 %v967
    %1264 = vmatpush1.msra.mxu0 %v966
    %1265 = vmatprep.subr.mxu0 %v963
    %1266 = vmatpush1.msra.mxu0 %v962
    %1267 = vmatprep.subr.mxu0 %v959
    %1268 = vmatpush1.msra.mxu0 %v958
    %1269 = vmatprep.subr.mxu0 %v955
    %1270 = vmatpush1.msra.mxu0 %v954
    %1271 = vmatprep.subr.mxu0 %v951
    %1272 = vmatpush1.msra.mxu0 %v950
    %1273 = vmatprep.subr.mxu0 %v947
    %1274 = vmatpush1.msra.mxu0 %v946
    %1275 = vmatprep.subr.mxu0 %v943
    %1276 = vmatpush1.msra.mxu0 %v942
    %1277 = vmatprep.subr.mxu0 %v939
    %1278 = vmatpush1.msra.mxu0 %v938
    %1279 = vmatprep.subr.mxu0 %v935
    %1280 = vmatpush1.msra.mxu0 %v934
    %1281 = vmatprep.subr.mxu0 %v931
    %1282 = vmatpush1.msra.mxu0 %v930
    %1283 = vmatprep.subr.mxu0 %v927
    %1284 = vmatpush1.msra.mxu0 %v926
    %1285 = vmatprep.subr.mxu0 %v923
    %1286 = vmatpush1.msra.mxu0 %v922
    %1287 = vmatprep.subr.mxu0 %v919
    %1288 = vmatpush1.msra.mxu0 %v918
    %1289 = vmatprep.subr.mxu0 %v1043
    %1290 = vmatpush2.msra.mxu0 %v1042
    %1291 = vmatprep.subr.mxu0 %v1039
    %1292 = vmatpush2.msra.mxu0 %v1038
    %1293 = vmatprep.subr.mxu0 %v1035
    %1294 = vmatpush2.msra.mxu0 %v1034
    %1295 = vmatprep.subr.mxu0 %v1031
    %1296 = vmatpush2.msra.mxu0 %v1030
    %1297 = vmatprep.subr.mxu0 %v1027
    %1298 = vmatpush2.msra.mxu0 %v1026
    %1299 = vmatprep.subr.mxu0 %v1023
    %1300 = vmatpush2.msra.mxu0 %v1022
    %1301 = vmatprep.subr.mxu0 %v1019
    %1302 = vmatpush2.msra.mxu0 %v1018
    %1303 = vmatprep.subr.mxu0 %v1015
    %1304 = vmatpush2.msra.mxu0 %v1014
    %1305 = vmatprep.subr.mxu0 %v1011
    %1306 = vmatpush2.msra.mxu0 %v1010
    %1307 = vmatprep.subr.mxu0 %v1007
    %1308 = vmatpush2.msra.mxu0 %v1006
    %1309 = vmatprep.subr.mxu0 %v1003
    %1310 = vmatpush2.msra.mxu0 %v1002
    %1311 = vmatprep.subr.mxu0 %v999
    %1312 = vmatpush2.msra.mxu0 %v998
    %1313 = vmatprep.subr.mxu0 %v995
    %1314 = vmatpush2.msra.mxu0 %v994
    %1315 = vmatprep.subr.mxu0 %v991
    %1316 = vmatpush2.msra.mxu0 %v990
    %1317 = vmatprep.subr.mxu0 %v987
    %1318 = vmatpush2.msra.mxu0 %v986
    %1319 = vmatprep.subr.mxu0 %v983
    %1320 = vmatpush2.msra.mxu0 %v982
    %1321 = vmatprep.mubr.f32.mxu0 %v787
    %1322 = vmatmul.mubr.f32.gmra.mxu0 %v786
    %v1323 = vpop.f32.mrf.mxu0
    %v1324 = vadd.f32 %v1253, %v1323
    %v1325 = vpop.f32.mrf.mxu0
    %v1326 = vadd.f32 %v1255, %v1325
    %1327 = vdwg.mxu0
    %vm1328 = vcmp.gt.f32.partialorder %v1182, 0.0
    %vm1329 = vcmp.gt.f32.partialorder %v1184, 0.0
    %vm1330 = vcmp.gt.f32.partialorder %v1324, 0.0
    %vm1331 = vcmp.gt.f32.partialorder %v1326, 0.0
    %v1332 = vmul.f32 %v1182, 0.1
    %v1333 = vmul.f32 %v1184, 0.1
    %v1334 = vmul.f32 %v1324, 0.1
    %v1335 = vmul.f32 %v1326, 0.1
    %v1336 = vsel %vm1328, %v1182, %v1332
    %v1337 = vsel %vm1329, %v1184, %v1333
    %v1338 = vsel %vm1330, %v1324, %v1334
    %v1339 = vsel %vm1331, %v1326, %v1335
    %v1340 = vld [vmem:[#allocation7] sm:$0xff]
    %v1341 = vld [vmem:[#allocation7 + $0x8] sm:$0xff]
    %v1342 = vld [vmem:[#allocation7 + $0x10] sm:$0xff]
    %v1343 = vld [vmem:[#allocation7 + $0x18] sm:$0xff]
    %v1344 = vld [vmem:[#allocation7 + $0x20] sm:$0xff]
    %v1345 = vld [vmem:[#allocation7 + $0x28] sm:$0xff]
    %v1346 = vld [vmem:[#allocation7 + $0x30] sm:$0xff]
    %v1347 = vld [vmem:[#allocation7 + $0x38] sm:$0xff]
    %v1348 = vld [vmem:[#allocation7 + $0x40] sm:$0xff]
    %v1349 = vld [vmem:[#allocation7 + $0x48] sm:$0xff]
    %v1350 = vld [vmem:[#allocation7 + $0x50] sm:$0xff]
    %v1351 = vld [vmem:[#allocation7 + $0x58] sm:$0xff]
    %v1352 = vld [vmem:[#allocation7 + $0x60] sm:$0xff]
    %v1353 = vld [vmem:[#allocation7 + $0x68] sm:$0xff]
    %v1354 = vld [vmem:[#allocation7 + $0x70] sm:$0xff]
    %v1355 = vld [vmem:[#allocation7 + $0x78] sm:$0xff]
    %v1356 = vld [vmem:[#allocation7 + $0x80] sm:$0xff]
    %v1357 = vld [vmem:[#allocation7 + $0x88] sm:$0xff]
    %v1358 = vld [vmem:[#allocation7 + $0x90] sm:$0xff]
    %v1359 = vld [vmem:[#allocation7 + $0x98] sm:$0xff]
    %v1360 = vld [vmem:[#allocation7 + $0xa0] sm:$0xff]
    %v1361 = vld [vmem:[#allocation7 + $0xa8] sm:$0xff]
    %v1362 = vld [vmem:[#allocation7 + $0xb0] sm:$0xff]
    %v1363 = vld [vmem:[#allocation7 + $0xb8] sm:$0xff]
    %v1364 = vld [vmem:[#allocation7 + $0xc0] sm:$0xff]
    %v1365 = vld [vmem:[#allocation7 + $0xc8] sm:$0xff]
    %v1366 = vld [vmem:[#allocation7 + $0xd0] sm:$0xff]
    %v1367 = vld [vmem:[#allocation7 + $0xd8] sm:$0xff]
    %v1368 = vld [vmem:[#allocation7 + $0xe0] sm:$0xff]
    %v1369 = vld [vmem:[#allocation7 + $0xe8] sm:$0xff]
    %v1370 = vld [vmem:[#allocation7 + $0xf0] sm:$0xff]
    %v1371 = vld [vmem:[#allocation7 + $0xf8] sm:$0xff]
    %v1372 = vld [vmem:[#allocation7 + $0x100] sm:$0xff]
    %v1373 = vld [vmem:[#allocation7 + $0x108] sm:$0xff]
    %v1374 = vld [vmem:[#allocation7 + $0x110] sm:$0xff]
    %v1375 = vld [vmem:[#allocation7 + $0x118] sm:$0xff]
    %v1376 = vld [vmem:[#allocation7 + $0x120] sm:$0xff]
    %v1377 = vld [vmem:[#allocation7 + $0x128] sm:$0xff]
    %v1378 = vld [vmem:[#allocation7 + $0x130] sm:$0xff]
    %v1379 = vld [vmem:[#allocation7 + $0x138] sm:$0xff]
    %v1380 = vld [vmem:[#allocation7 + $0x140] sm:$0xff]
    %v1381 = vld [vmem:[#allocation7 + $0x148] sm:$0xff]
    %v1382 = vld [vmem:[#allocation7 + $0x150] sm:$0xff]
    %v1383 = vld [vmem:[#allocation7 + $0x158] sm:$0xff]
    %v1384 = vld [vmem:[#allocation7 + $0x160] sm:$0xff]
    %v1385 = vld [vmem:[#allocation7 + $0x168] sm:$0xff]
    %v1386 = vld [vmem:[#allocation7 + $0x170] sm:$0xff]
    %v1387 = vld [vmem:[#allocation7 + $0x178] sm:$0xff]
    %v1388 = vld [vmem:[#allocation7 + $0x180] sm:$0xff]
    %v1389 = vld [vmem:[#allocation7 + $0x188] sm:$0xff]
    %v1390 = vld [vmem:[#allocation7 + $0x190] sm:$0xff]
    %v1391 = vld [vmem:[#allocation7 + $0x198] sm:$0xff]
    %v1392 = vld [vmem:[#allocation7 + $0x1a0] sm:$0xff]
    %v1393 = vld [vmem:[#allocation7 + $0x1a8] sm:$0xff]
    %v1394 = vld [vmem:[#allocation7 + $0x1b0] sm:$0xff]
    %v1395 = vld [vmem:[#allocation7 + $0x1b8] sm:$0xff]
    %v1396 = vld [vmem:[#allocation7 + $0x1c0] sm:$0xff]
    %v1397 = vld [vmem:[#allocation7 + $0x1c8] sm:$0xff]
    %v1398 = vld [vmem:[#allocation7 + $0x1d0] sm:$0xff]
    %v1399 = vld [vmem:[#allocation7 + $0x1d8] sm:$0xff]
    %v1400 = vld [vmem:[#allocation7 + $0x1e0] sm:$0xff]
    %v1401 = vld [vmem:[#allocation7 + $0x1e8] sm:$0xff]
    %v1402 = vld [vmem:[#allocation7 + $0x1f0] sm:$0xff]
    %v1403 = vld [vmem:[#allocation7 + $0x1f8] sm:$0xff]
    %1404 = vmatprep.subr.mxu0 0.0
    %1405 = vmatpush1.msra.mxu0 %v1355
    %1406 = vmatprep.subr.mxu0 0.0
    %1407 = vmatpush1.msra.mxu0 %v1354
    %1408 = vmatprep.subr.mxu0 0.0
    %1409 = vmatpush1.msra.mxu0 %v1353
    %1410 = vmatprep.subr.mxu0 0.0
    %1411 = vmatpush1.msra.mxu0 %v1352
    %1412 = vmatprep.subr.mxu0 0.0
    %1413 = vmatpush1.msra.mxu0 %v1351
    %1414 = vmatprep.subr.mxu0 0.0
    %1415 = vmatpush1.msra.mxu0 %v1350
    %1416 = vmatprep.subr.mxu0 0.0
    %1417 = vmatpush1.msra.mxu0 %v1349
    %1418 = vmatprep.subr.mxu0 0.0
    %1419 = vmatpush1.msra.mxu0 %v1348
    %1420 = vmatprep.subr.mxu0 0.0
    %1421 = vmatpush1.msra.mxu0 %v1347
    %1422 = vmatprep.subr.mxu0 0.0
    %1423 = vmatpush1.msra.mxu0 %v1346
    %1424 = vmatprep.subr.mxu0 0.0
    %1425 = vmatpush1.msra.mxu0 %v1345
    %1426 = vmatprep.subr.mxu0 0.0
    %1427 = vmatpush1.msra.mxu0 %v1344
    %1428 = vmatprep.subr.mxu0 0.0
    %1429 = vmatpush1.msra.mxu0 %v1343
    %1430 = vmatprep.subr.mxu0 0.0
    %1431 = vmatpush1.msra.mxu0 %v1342
    %1432 = vmatprep.subr.mxu0 0.0
    %1433 = vmatpush1.msra.mxu0 %v1341
    %1434 = vmatprep.subr.mxu0 0.0
    %1435 = vmatpush1.msra.mxu0 %v1340
    %1436 = vmatprep.subr.mxu0 0.0
    %1437 = vmatpush2.msra.mxu0 %v1371
    %1438 = vmatprep.subr.mxu0 0.0
    %1439 = vmatpush2.msra.mxu0 %v1370
    %1440 = vmatprep.subr.mxu0 0.0
    %1441 = vmatpush2.msra.mxu0 %v1369
    %1442 = vmatprep.subr.mxu0 0.0
    %1443 = vmatpush2.msra.mxu0 %v1368
    %1444 = vmatprep.subr.mxu0 0.0
    %1445 = vmatpush2.msra.mxu0 %v1367
    %1446 = vmatprep.subr.mxu0 0.0
    %1447 = vmatpush2.msra.mxu0 %v1366
    %1448 = vmatprep.subr.mxu0 0.0
    %1449 = vmatpush2.msra.mxu0 %v1365
    %1450 = vmatprep.subr.mxu0 0.0
    %1451 = vmatpush2.msra.mxu0 %v1364
    %1452 = vmatprep.subr.mxu0 0.0
    %1453 = vmatpush2.msra.mxu0 %v1363
    %1454 = vmatprep.subr.mxu0 0.0
    %1455 = vmatpush2.msra.mxu0 %v1362
    %1456 = vmatprep.subr.mxu0 0.0
    %1457 = vmatpush2.msra.mxu0 %v1361
    %1458 = vmatprep.subr.mxu0 0.0
    %1459 = vmatpush2.msra.mxu0 %v1360
    %1460 = vmatprep.subr.mxu0 0.0
    %1461 = vmatpush2.msra.mxu0 %v1359
    %1462 = vmatprep.subr.mxu0 0.0
    %1463 = vmatpush2.msra.mxu0 %v1358
    %1464 = vmatprep.subr.mxu0 0.0
    %1465 = vmatpush2.msra.mxu0 %v1357
    %1466 = vmatprep.subr.mxu0 0.0
    %1467 = vmatpush2.msra.mxu0 %v1356
    %1468 = vmatprep.mubr.f32.mxu0 %v1337
    %1469 = vmatmul.mubr.f32.gmra.mxu0 %v1336
    %v1470 = vpop.f32.mrf.mxu0
    %v1471 = vadd.f32 %v773, %v1470
    %v1472 = vpop.f32.mrf.mxu0
    %1473 = vdwg.mxu0
    %1474 = vmatprep.subr.mxu0 0.0
    %1475 = vmatpush1.msra.mxu0 %v1387
    %1476 = vmatprep.subr.mxu0 0.0
    %1477 = vmatpush1.msra.mxu0 %v1386
    %1478 = vmatprep.subr.mxu0 0.0
    %1479 = vmatpush1.msra.mxu0 %v1385
    %1480 = vmatprep.subr.mxu0 0.0
    %1481 = vmatpush1.msra.mxu0 %v1384
    %1482 = vmatprep.subr.mxu0 0.0
    %1483 = vmatpush1.msra.mxu0 %v1383
    %1484 = vmatprep.subr.mxu0 0.0
    %1485 = vmatpush1.msra.mxu0 %v1382
    %1486 = vmatprep.subr.mxu0 0.0
    %1487 = vmatpush1.msra.mxu0 %v1381
    %1488 = vmatprep.subr.mxu0 0.0
    %1489 = vmatpush1.msra.mxu0 %v1380
    %1490 = vmatprep.subr.mxu0 0.0
    %1491 = vmatpush1.msra.mxu0 %v1379
    %1492 = vmatprep.subr.mxu0 0.0
    %1493 = vmatpush1.msra.mxu0 %v1378
    %1494 = vmatprep.subr.mxu0 0.0
    %1495 = vmatpush1.msra.mxu0 %v1377
    %1496 = vmatprep.subr.mxu0 0.0
    %1497 = vmatpush1.msra.mxu0 %v1376
    %1498 = vmatprep.subr.mxu0 0.0
    %1499 = vmatpush1.msra.mxu0 %v1375
    %1500 = vmatprep.subr.mxu0 0.0
    %1501 = vmatpush1.msra.mxu0 %v1374
    %1502 = vmatprep.subr.mxu0 0.0
    %1503 = vmatpush1.msra.mxu0 %v1373
    %1504 = vmatprep.subr.mxu0 0.0
    %1505 = vmatpush1.msra.mxu0 %v1372
    %1506 = vmatprep.subr.mxu0 0.0
    %1507 = vmatpush2.msra.mxu0 %v1403
    %1508 = vmatprep.subr.mxu0 0.0
    %1509 = vmatpush2.msra.mxu0 %v1402
    %1510 = vmatprep.subr.mxu0 0.0
    %1511 = vmatpush2.msra.mxu0 %v1401
    %1512 = vmatprep.subr.mxu0 0.0
    %1513 = vmatpush2.msra.mxu0 %v1400
    %1514 = vmatprep.subr.mxu0 0.0
    %1515 = vmatpush2.msra.mxu0 %v1399
    %1516 = vmatprep.subr.mxu0 0.0
    %1517 = vmatpush2.msra.mxu0 %v1398
    %1518 = vmatprep.subr.mxu0 0.0
    %1519 = vmatpush2.msra.mxu0 %v1397
    %1520 = vmatprep.subr.mxu0 0.0
    %1521 = vmatpush2.msra.mxu0 %v1396
    %1522 = vmatprep.subr.mxu0 0.0
    %1523 = vmatpush2.msra.mxu0 %v1395
    %1524 = vmatprep.subr.mxu0 0.0
    %1525 = vmatpush2.msra.mxu0 %v1394
    %1526 = vmatprep.subr.mxu0 0.0
    %1527 = vmatpush2.msra.mxu0 %v1393
    %1528 = vmatprep.subr.mxu0 0.0
    %1529 = vmatpush2.msra.mxu0 %v1392
    %1530 = vmatprep.subr.mxu0 0.0
    %1531 = vmatpush2.msra.mxu0 %v1391
    %1532 = vmatprep.subr.mxu0 0.0
    %1533 = vmatpush2.msra.mxu0 %v1390
    %1534 = vmatprep.subr.mxu0 0.0
    %1535 = vmatpush2.msra.mxu0 %v1389
    %1536 = vmatprep.subr.mxu0 0.0
    %1537 = vmatpush2.msra.mxu0 %v1388
    %1538 = vmatprep.mubr.f32.mxu0 %v1339
    %1539 = vmatmul.mubr.f32.gmra.mxu0 %v1338
    %v1540 = vpop.f32.mrf.mxu0
    %v1541 = vadd.f32 %v1471, %v1540
    %v1542 = vpop.f32.mrf.mxu0
    %1543 = vdwg.mxu0
    %vm1544 = vcmp.gt.f32.partialorder %v1541, 0.0
    %v1545 = vmul.f32 %v1541, 0.1
    %v1546 = vsel %vm1544, %v1541, %v1545
    %1547 = vst [vmem:[%s5] sm:$0x3] %v1546
    // Predicated region
    $region38: #{decoder_forward.1} parent=1 // pred_check
      _
    $region39: #{decoder_forward.1} parent=1 // pred_check_branch
      %1549 = sbr.rel (0) target = $region41
    $region40: #{decoder_forward.1} parent=1 // pred_region
      _
    $region41: #{decoder_forward.1} parent=1 // pred_fallthru
      _
    // Predicated region
    $region42: #{decoder_forward.1} parent=1 // pred_check
      _
    $region43: #{decoder_forward.1} parent=1 // pred_check_branch
      %1551 = sbr.rel (0) target = $region45
    $region44: #{decoder_forward.1} parent=1 // pred_region
      _
    $region45: #{decoder_forward.1} parent=1 // pred_fallthru
      _
    %1552 = vsyncpa [#allocation3], 1
    %1553 = vsyncpa [#allocation5], 1
    %1554 = vsyncpa [#allocation8], 1

</llo_original>
